<compile_context>
chip_gen: v6e
topology: v6e:2x2x1
jax: 0.10.0
libtpu: 0.0.40
codegen_flags: <defaults>
</compile_context>

<pallas_src>
import jax
import jax.numpy as jnp
from jax.experimental import pallas as pl
from jax.experimental.pallas import tpu as pltpu


# ----------------------------------------------------------------------------
# Sizing helpers
# ----------------------------------------------------------------------------

def _vmem_capacity_bytes():
    """Per-core VMEM capacity; safe fallback = 64 MiB (v7x floor)."""
    try:
        return int(pltpu.get_tpu_info().vmem_capacity_bytes)
    except Exception:
        return 64 << 20


def _choose_tile_h(H, W, C, K, x_itemsize, mxu_itemsize, budget_bytes,
                   max_rows=1024, prefer_multi=False):
    """Pick TH (output rows per grid step).

    Candidates are multiples of 8 dividing H (plus H itself).  The largest
    candidate whose per-step working set fits the budget and whose matmul
    M-tile is <= max_rows wins.  `prefer_multi` biases towards >=2 H-tiles
    (exercises the tiled path / bounds single-image working sets).
    """
    def working_set(th):
        rows = th * W
        return (2 * (th + 2) * (W + 2) * C * x_itemsize    # double-buffered halo tile
                + 2 * rows * C * x_itemsize                # double-buffered output block
                + (th + 2) * W * K * C * mxu_itemsize      # kx-only im2col scratch
                + rows * C * 4)                            # f32 accumulator

    cands = [t for t in range(8, H, 8) if H % t == 0]
    if not prefer_multi or not cands:
        cands = cands + [H]
    fits = [t for t in cands if t * W <= max_rows and working_set(t) <= budget_bytes]
    if fits:
        return max(fits)
    # Validated fallback: nothing meets the budget -> smallest candidate.
    # TODO(synk): add a W-tiling grid axis for rows so wide W*C never overshoots.
    return min(cands)


# ----------------------------------------------------------------------------
# Shared compute body: kx-only im2col + 3 accumulated MXU matmuls
# ----------------------------------------------------------------------------

def _conv_matmuls(band_fn, w_ref, b_ref, o_ref, im_ref, acc_ref, *, TH, W, C, K):
    """band_fn(kx) -> ((TH+2)*W, C) value: the kx-shifted column band.

    im_ref:  ((TH+2)*W, K*C)  kx-only im2col scratch (mxu dtype)
    w_ref:   (K, K*C, C)      per-ky weight matrices (identity folded at centre)
    acc_ref: (TH*W, C)        f32 accumulator
    o_ref:   (TH*W, C)        output rows for this tile
    """
    rows = TH * W
    # Build the kx-only im2col once over all TH+2 padded rows (3 band copies).
    for kx in range(K):
        im_ref[:, kx * C:(kx + 1) * C] = band_fn(kx).astype(im_ref.dtype)
    # ky shifts are free row slices of the scratch: accumulate 3 matmuls.
    acc_ref[...] = jnp.dot(im_ref[0:rows, :], w_ref[0],
                           preferred_element_type=jnp.float32)
    for ky in range(1, K):
        acc_ref[...] += jnp.dot(im_ref[ky * W: ky * W + rows, :], w_ref[ky],
                                preferred_element_type=jnp.float32)
    # Bias (residual already folded into the centre tap of w_ref).
    o_ref[...] = (acc_ref[...] + b_ref[...].astype(jnp.float32)).astype(o_ref.dtype)


def _make_kernel_whole(TH, W, C, K):
    """Whole padded image per grid step (auto-pipelined BlockSpec input)."""
    def kernel(x_ref, w_ref, b_ref, o_ref, im_ref, acc_ref):
        # x_ref: (TH+2, W+2, C) padded image.
        def band(kx):
            return x_ref[:, kx:kx + W, :].reshape((TH + 2) * W, C)
        _conv_matmuls(band, w_ref, b_ref, o_ref, im_ref, acc_ref,
                      TH=TH, W=W, C=C, K=K)
    return kernel


def _make_kernel_tiled(TH, W, C, K):
    """H-tiled path: x_pad stays in HBM; halo windows are manually DMA'd with
    double-buffering (prefetch tile t+1 while computing tile t).  The carried
    DMA state lives entirely within one image, so the batch axis stays
    'parallel' (megacore-safe when N >= 2)."""
    def kernel(x_hbm, w_ref, b_ref, o_ref, xbuf, sem, im_ref, acc_ref):
        n = pl.program_id(0)
        t = pl.program_id(1)
        n_th = pl.num_programs(1)
        slot = t % 2

        def start(tt, sl):
            pltpu.make_async_copy(
                x_hbm.at[n, pl.ds(tt * TH, TH + 2)],
                xbuf.at[sl], sem.at[sl]).start()

        @pl.when(t == 0)
        def _():            # prime the first tile of this image
            start(t, slot)

        @pl.when(t + 1 < n_th)
        def _():            # prefetch the next tile into the other slot
            start(t + 1, 1 - slot)

        # Wait for this tile's halo window (same transfer shape as started).
        pltpu.make_async_copy(
            x_hbm.at[n, pl.ds(t * TH, TH + 2)],
            xbuf.at[slot], sem.at[slot]).wait()

        def band(kx):
            return xbuf[slot, :, kx:kx + W, :].reshape((TH + 2) * W, C)

        _conv_matmuls(band, w_ref, b_ref, o_ref, im_ref, acc_ref,
                      TH=TH, W=W, C=C, K=K)
    return kernel


# ----------------------------------------------------------------------------
# Wrapper
# ----------------------------------------------------------------------------

def wide_block_forward(x_nchw, weight, bias):
    """x_nchw: (N, C, H, W); weight: (C, C, 3, 3) [PyTorch OIHW]; bias: (C,)."""
    N, C, H, W = x_nchw.shape
    K = weight.shape[-1]
    assert weight.shape == (C, C, K, K), "residual block needs Cin == Cout"
    assert bias.shape == (C,)

    # MXU feed dtype: bf16 inputs go through the MXU as bf16 (f32 accumulate);
    # f32 inputs stay f32 for bit-level parity with the reference.
    mxu_dtype = jnp.bfloat16 if x_nchw.dtype == jnp.bfloat16 else jnp.float32
    x_itemsize = jnp.dtype(x_nchw.dtype).itemsize
    mxu_itemsize = jnp.dtype(mxu_dtype).itemsize

    # Generation-aware VMEM sizing (v7x: 64 MiB/core, v5e/v6e: 128 MiB).
    vmem_cap = _vmem_capacity_bytes()
    tile_budget = vmem_cap // 2
    vmem_limit = int(min(max(vmem_cap * 3 // 4, 32 << 20), vmem_cap))

    TH = _choose_tile_h(H, W, C, K, x_itemsize, mxu_itemsize, tile_budget,
                        max_rows=1024, prefer_multi=(N == 1 and H >= 16))
    n_th = H // TH
    assert n_th * TH == H

    # NCHW -> NHWC (channels on the lane axis) + zero pad.  XLA fuses these
    # layout ops into a single HBM pass; there is NO halo duplication anymore.
    x_nhwc = jnp.transpose(x_nchw, (0, 2, 3, 1))
    x_pad = jnp.pad(x_nhwc, ((0, 0), (1, 1), (1, 1), (0, 0)))

    # OIHW -> (ky, kx, Cin, Cout); fold the residual identity into the centre
    # tap so the accumulated matmuls compute conv(x) + x directly; reshape to
    # per-ky (kx*Cin, Cout) matrices matching the kx-only im2col layout.
    w_taps = jnp.transpose(weight, (2, 3, 1, 0)).astype(jnp.float32)
    w_taps = w_taps.at[K // 2, K // 2].add(jnp.eye(C, dtype=jnp.float32))
    w3 = w_taps.reshape(K, K * C, C).astype(mxu_dtype)        # (K, K*C, C)
    b2d = bias.reshape(1, C).astype(jnp.float32)

    if n_th == 1:
        # Whole padded image fits the budget: plain auto-pipelined BlockSpecs.
        out_flat = pl.pallas_call(
            _make_kernel_whole(H, W, C, K),
            out_shape=jax.ShapeDtypeStruct((N, H * W, C), x_nchw.dtype),
            grid_spec=pltpu.PrefetchScalarGridSpec(
                num_scalar_prefetch=0,
                grid=(N,),
                in_specs=[
                    pl.BlockSpec((None, H + 2, W + 2, C), lambda n: (n, 0, 0, 0)),
                    pl.BlockSpec((K, K * C, C), lambda n: (0, 0, 0)),
                    pl.BlockSpec((1, C), lambda n: (0, 0)),
                ],
                out_specs=pl.BlockSpec((None, H * W, C), lambda n: (n, 0, 0)),
                scratch_shapes=[
                    pltpu.VMEM(((H + 2) * W, K * C), mxu_dtype),   # kx im2col
                    pltpu.VMEM((H * W, C), jnp.float32),           # f32 acc
                ]),
            compiler_params=pltpu.CompilerParams(
                dimension_semantics=("parallel",),
                vmem_limit_bytes=vmem_limit),
        )(x_pad, w3, b2d)
    else:
        # H-tiled path: x_pad stays in HBM; halo windows via manual DMA with
        # double-buffering.  Batch axis parallel (megacore when N>=2), tile
        # axis arbitrary (carries the per-image prefetch state).
        out_flat = pl.pallas_call(
            _make_kernel_tiled(TH, W, C, K),
            out_shape=jax.ShapeDtypeStruct((N, H * W, C), x_nchw.dtype),
            grid_spec=pltpu.PrefetchScalarGridSpec(
                num_scalar_prefetch=0,
                grid=(N, n_th),
                in_specs=[
                    pl.BlockSpec(memory_space=pl.ANY),             # x_pad in HBM
                    pl.BlockSpec((K, K * C, C), lambda n, t: (0, 0, 0)),
                    pl.BlockSpec((1, C), lambda n, t: (0, 0)),
                ],
                out_specs=pl.BlockSpec((None, TH * W, C), lambda n, t: (n, t, 0)),
                scratch_shapes=[
                    pltpu.VMEM((2, TH + 2, W + 2, C), x_pad.dtype),  # halo buf
                    pltpu.SemaphoreType.DMA((2,)),
                    pltpu.VMEM(((TH + 2) * W, K * C), mxu_dtype),    # kx im2col
                    pltpu.VMEM((TH * W, C), jnp.float32),            # f32 acc
                ]),
            compiler_params=pltpu.CompilerParams(
                dimension_semantics=("parallel", "arbitrary"),
                vmem_limit_bytes=vmem_limit),
        )(x_pad, w3, b2d)

    # (N, H*W, C) -> (N, H, W, C) -> NCHW (PyTorch output convention).
    return jnp.transpose(out_flat.reshape(N, H, W, C), (0, 3, 1, 2))


def wide_block_reference(x_nchw, weight, bias):
    """Pure-JAX reference (lax conv) for correctness checking."""
    y = jax.lax.conv_general_dilated(
        x_nchw.astype(jnp.float32),
        weight.astype(jnp.float32),
        window_strides=(1, 1),
        padding=((1, 1), (1, 1)),
        dimension_numbers=("NCHW", "OIHW", "NCHW"),
    )
    y = y + bias.reshape(1, -1, 1, 1)
    return (y + x_nchw.astype(jnp.float32)).astype(x_nchw.dtype)


if __name__ == "__main__":
    key = jax.random.PRNGKey(0)
    kx, kw, kb, kx2 = jax.random.split(key, 4)

    N, C, H, W = 2, 4, 16, 16
    x = jax.random.normal(kx, (N, C, H, W), dtype=jnp.float32)
    # Deterministic synthetic parameters (Conv2d(C, C, 3, 3) + bias).
    weight = jax.random.normal(kw, (C, C, 3, 3), dtype=jnp.float32) * 0.1
    bias = jax.random.normal(kb, (C,), dtype=jnp.float32) * 0.1

    # Case 1: whole-image path (N=2 -> auto-pipelined BlockSpec, no halo).
    out = jax.block_until_ready(wide_block_forward(x, weight, bias))
    ref = wide_block_reference(x, weight, bias)
    assert out.shape == (N, C, H, W)
    assert jnp.allclose(out, ref, atol=1e-4, rtol=1e-4), "mismatch vs reference"

    # Case 2: taller single image -> exercises the H-tiled manual-DMA halo path.
    x2 = jax.random.normal(kx2, (1, C, 32, 16), dtype=jnp.float32)
    out2 = jax.block_until_ready(wide_block_forward(x2, weight, bias))
    ref2 = wide_block_reference(x2, weight, bias)
    assert jnp.allclose(out2, ref2, atol=1e-4, rtol=1e-4), "mismatch (tiled H)"

    print("KERNEL_OK")
</pallas_src>

<mosaic_0001>
module attributes {stable_mosaic.version = 11 : i64} {
  func.func @kernel(%arg0: i32, %arg1: memref<1x18x18x4xf32, #tpu.memory_space<vmem>>, %arg2: memref<3x12x4xf32, #tpu.memory_space<vmem>>, %arg3: memref<1x4xf32, #tpu.memory_space<vmem>>, %arg4: memref<1x256x4xf32, #tpu.memory_space<vmem>>, %arg5: memref<288x12xf32, #tpu.memory_space<vmem>>, %arg6: memref<256x4xf32, #tpu.memory_space<vmem>>) attributes {dimension_semantics = [#tpu.dimension_semantics<parallel>], iteration_bounds = array<i64: 2>, scalar_prefetch = 0 : i64, scratch_operands = 2 : i64, tpu.core_type = #tpu.core_type<tc>, window_params = [{transform_indices = @transform_0, window_bounds = array<i64: 1, 18, 18, 4>}, {pipeline_mode = #tpu.pipeline_mode<synchronous>, transform_indices = @transform_1, window_bounds = array<i64: 3, 12, 4>}, {pipeline_mode = #tpu.pipeline_mode<synchronous>, transform_indices = @transform_2, window_bounds = array<i64: 1, 4>}, {transform_indices = @transform_3, window_bounds = array<i64: 1, 256, 4>}]} {
    %c0 = arith.constant 0 : index
    %c0_0 = arith.constant 0 : index
    %c0_1 = arith.constant 0 : index
    %c0_2 = arith.constant 0 : index
    %0 = vector.load %arg1[%c0, %c0_0, %c0_1, %c0_2] : memref<1x18x18x4xf32, #tpu.memory_space<vmem>>, vector<1x18x16x4xf32>
    %1 = vector.shape_cast %0 : vector<1x18x16x4xf32> to vector<18x16x4xf32>
    %2 = vector.shape_cast %1 : vector<18x16x4xf32> to vector<288x4xf32>
    %c0_3 = arith.constant 0 : index
    %c0_4 = arith.constant 0 : index
    %3 = vector.load %arg5[%c0_3, %c0_4] : memref<288x12xf32, #tpu.memory_space<vmem>>, vector<288x4xf32>
    tpu.vector_store %arg5[%c0_3, %c0_4], %2 {strides = array<i32>} : memref<288x12xf32, #tpu.memory_space<vmem>>, vector<288x4xf32>,
    %c0_5 = arith.constant 0 : index
    %c0_6 = arith.constant 0 : index
    %c1 = arith.constant 1 : index
    %c0_7 = arith.constant 0 : index
    %4 = vector.load %arg1[%c0_5, %c0_6, %c1, %c0_7] : memref<1x18x18x4xf32, #tpu.memory_space<vmem>>, vector<1x18x16x4xf32>
    %5 = vector.shape_cast %4 : vector<1x18x16x4xf32> to vector<18x16x4xf32>
    %6 = vector.shape_cast %5 : vector<18x16x4xf32> to vector<288x4xf32>
    %c0_8 = arith.constant 0 : index
    %c4 = arith.constant 4 : index
    %7 = vector.load %arg5[%c0_8, %c4] : memref<288x12xf32, #tpu.memory_space<vmem>>, vector<288x4xf32>
    tpu.vector_store %arg5[%c0_8, %c4], %6 {strides = array<i32>} : memref<288x12xf32, #tpu.memory_space<vmem>>, vector<288x4xf32>,
    %c0_9 = arith.constant 0 : index
    %c0_10 = arith.constant 0 : index
    %c2 = arith.constant 2 : index
    %c0_11 = arith.constant 0 : index
    %8 = vector.load %arg1[%c0_9, %c0_10, %c2, %c0_11] : memref<1x18x18x4xf32, #tpu.memory_space<vmem>>, vector<1x18x16x4xf32>
    %9 = vector.shape_cast %8 : vector<1x18x16x4xf32> to vector<18x16x4xf32>
    %10 = vector.shape_cast %9 : vector<18x16x4xf32> to vector<288x4xf32>
    %c0_12 = arith.constant 0 : index
    %c8 = arith.constant 8 : index
    %11 = vector.load %arg5[%c0_12, %c8] : memref<288x12xf32, #tpu.memory_space<vmem>>, vector<288x4xf32>
    tpu.vector_store %arg5[%c0_12, %c8], %10 {strides = array<i32>} : memref<288x12xf32, #tpu.memory_space<vmem>>, vector<288x4xf32>,
    %c0_13 = arith.constant 0 : index
    %c0_14 = arith.constant 0 : index
    %12 = vector.load %arg5[%c0_13, %c0_14] : memref<288x12xf32, #tpu.memory_space<vmem>>, vector<256x12xf32>
    %c0_15 = arith.constant 0 : index
    %c0_16 = arith.constant 0 : index
    %c0_17 = arith.constant 0 : index
    %13 = vector.load %arg2[%c0_15, %c0_16, %c0_17] : memref<3x12x4xf32, #tpu.memory_space<vmem>>, vector<1x12x4xf32>
    %14 = vector.shape_cast %13 : vector<1x12x4xf32> to vector<12x4xf32>
    %cst = arith.constant dense<0.000000e+00> : vector<256x4xf32>
    %15 = tpu.matmul %12, %14, %cst {dimension_numbers = #tpu.dot_dimension_numbers<[1], [0], [0], [1], [0, 0, 1, 1], [], []>} : vector<256x12xf32>, vector<12x4xf32>, vector<256x4xf32> -> vector<256x4xf32>
    %c0_18 = arith.constant 0 : index
    %c0_19 = arith.constant 0 : index
    %16 = vector.load %arg6[%c0_18, %c0_19] : memref<256x4xf32, #tpu.memory_space<vmem>>, vector<256x4xf32>
    tpu.vector_store %arg6[%c0_18, %c0_19], %15 {strides = array<i32>} : memref<256x4xf32, #tpu.memory_space<vmem>>, vector<256x4xf32>,
    %c0_20 = arith.constant 0 : index
    %c0_21 = arith.constant 0 : index
    %17 = vector.load %arg6[%c0_20, %c0_21] : memref<256x4xf32, #tpu.memory_space<vmem>>, vector<256x4xf32>
    %c16 = arith.constant 16 : index
    %c0_22 = arith.constant 0 : index
    %18 = vector.load %arg5[%c16, %c0_22] : memref<288x12xf32, #tpu.memory_space<vmem>>, vector<256x12xf32>
    %c1_23 = arith.constant 1 : index
    %c0_24 = arith.constant 0 : index
    %c0_25 = arith.constant 0 : index
    %19 = vector.load %arg2[%c1_23, %c0_24, %c0_25] : memref<3x12x4xf32, #tpu.memory_space<vmem>>, vector<1x12x4xf32>
    %20 = vector.shape_cast %19 : vector<1x12x4xf32> to vector<12x4xf32>
    %cst_26 = arith.constant dense<0.000000e+00> : vector<256x4xf32>
    %21 = tpu.matmul %18, %20, %cst_26 {dimension_numbers = #tpu.dot_dimension_numbers<[1], [0], [0], [1], [0, 0, 1, 1], [], []>} : vector<256x12xf32>, vector<12x4xf32>, vector<256x4xf32> -> vector<256x4xf32>
    %22 = arith.addf %17, %21 : vector<256x4xf32>
    %c0_27 = arith.constant 0 : index
    %c0_28 = arith.constant 0 : index
    %23 = vector.load %arg6[%c0_27, %c0_28] : memref<256x4xf32, #tpu.memory_space<vmem>>, vector<256x4xf32>
    tpu.vector_store %arg6[%c0_27, %c0_28], %22 {strides = array<i32>} : memref<256x4xf32, #tpu.memory_space<vmem>>, vector<256x4xf32>,
    %c0_29 = arith.constant 0 : index
    %c0_30 = arith.constant 0 : index
    %24 = vector.load %arg6[%c0_29, %c0_30] : memref<256x4xf32, #tpu.memory_space<vmem>>, vector<256x4xf32>
    %c32 = arith.constant 32 : index
    %c0_31 = arith.constant 0 : index
    %25 = vector.load %arg5[%c32, %c0_31] : memref<288x12xf32, #tpu.memory_space<vmem>>, vector<256x12xf32>
    %c2_32 = arith.constant 2 : index
    %c0_33 = arith.constant 0 : index
    %c0_34 = arith.constant 0 : index
    %26 = vector.load %arg2[%c2_32, %c0_33, %c0_34] : memref<3x12x4xf32, #tpu.memory_space<vmem>>, vector<1x12x4xf32>
    %27 = vector.shape_cast %26 : vector<1x12x4xf32> to vector<12x4xf32>
    %cst_35 = arith.constant dense<0.000000e+00> : vector<256x4xf32>
    %28 = tpu.matmul %25, %27, %cst_35 {dimension_numbers = #tpu.dot_dimension_numbers<[1], [0], [0], [1], [0, 0, 1, 1], [], []>} : vector<256x12xf32>, vector<12x4xf32>, vector<256x4xf32> -> vector<256x4xf32>
    %29 = arith.addf %24, %28 : vector<256x4xf32>
    %c0_36 = arith.constant 0 : index
    %c0_37 = arith.constant 0 : index
    %30 = vector.load %arg6[%c0_36, %c0_37] : memref<256x4xf32, #tpu.memory_space<vmem>>, vector<256x4xf32>
    tpu.vector_store %arg6[%c0_36, %c0_37], %29 {strides = array<i32>} : memref<256x4xf32, #tpu.memory_space<vmem>>, vector<256x4xf32>,
    %c0_38 = arith.constant 0 : index
    %c0_39 = arith.constant 0 : index
    %31 = vector.load %arg6[%c0_38, %c0_39] : memref<256x4xf32, #tpu.memory_space<vmem>>, vector<256x4xf32>
    %c0_40 = arith.constant 0 : index
    %c0_41 = arith.constant 0 : index
    %32 = vector.load %arg3[%c0_40, %c0_41] : memref<1x4xf32, #tpu.memory_space<vmem>>, vector<1x4xf32>
    %33 = vector.broadcast %32 : vector<1x4xf32> to vector<256x4xf32>
    %34 = arith.addf %31, %33 : vector<256x4xf32>
    %c0_42 = arith.constant 0 : index
    %c0_43 = arith.constant 0 : index
    %c0_44 = arith.constant 0 : index
    %35 = vector.load %arg4[%c0_42, %c0_43, %c0_44] : memref<1x256x4xf32, #tpu.memory_space<vmem>>, vector<1x256x4xf32>
    %36 = vector.shape_cast %35 : vector<1x256x4xf32> to vector<256x4xf32>
    %37 = vector.shape_cast %34 : vector<256x4xf32> to vector<1x256x4xf32>
    tpu.vector_store %arg4[%c0_42, %c0_43, %c0_44], %37 {strides = array<i32>} : memref<1x256x4xf32, #tpu.memory_space<vmem>>, vector<1x256x4xf32>,
    return
  }
  func.func @transform_0(%arg0: i32) -> (i32, i32, i32, i32) {
    %c0_i32 = arith.constant 0 : i32
    %c0_i32_0 = arith.constant 0 : i32
    %c0_i32_1 = arith.constant 0 : i32
    %c0_i32_2 = arith.constant 0 : i32
    return %arg0, %c0_i32, %c0_i32_0, %c0_i32_1 : i32, i32, i32, i32
  }
  func.func @transform_1(%arg0: i32) -> (i32, i32, i32) {
    %c0_i32 = arith.constant 0 : i32
    %c0_i32_0 = arith.constant 0 : i32
    %c0_i32_1 = arith.constant 0 : i32
    %c0_i32_2 = arith.constant 0 : i32
    return %c0_i32, %c0_i32_0, %c0_i32_1 : i32, i32, i32
  }
  func.func @transform_2(%arg0: i32) -> (i32, i32) {
    %c0_i32 = arith.constant 0 : i32
    %c0_i32_0 = arith.constant 0 : i32
    %c0_i32_1 = arith.constant 0 : i32
    return %c0_i32, %c0_i32_0 : i32, i32
  }
  func.func @transform_3(%arg0: i32) -> (i32, i32, i32) {
    %c0_i32 = arith.constant 0 : i32
    %c0_i32_0 = arith.constant 0 : i32
    %c0_i32_1 = arith.constant 0 : i32
    return %arg0, %c0_i32, %c0_i32_0 : i32, i32, i32
  }
}

</mosaic_0001>

<llo_original>
// kernel: tpu_custom_call.1
$region0: #{tpu_custom_call.1}
  #allocation0 [shape = 'u32[]', space=smem, size = 0x4, offset = 0x4, fixed_abs, tag = 'smem constant byte address 0x4 - core index']
  #allocation1 [shape = 'u32[144,128]{1,0:T(1,128)}', space=vmem, size = 0x12000, scoped, tag = 'internal scratch']
  #allocation2 [shape = 'f32[288,12]{1,0:T(8,128)}', space=vmem, size = 0x24000, scoped, tag = 'scratch operand']
  #allocation3 [shape = 'f32[256,4]{1,0:T(8,128)}', space=vmem, size = 0x20000, scoped, tag = 'scratch operand']
  %s0 = inlined_call_operand.vmem [shape: f32[2,18,18,4], index: 0, kind: input, shape index: {}]
  %s1 = inlined_call_operand.vmem [shape: f32[3,12,4], index: 1, kind: input, shape index: {}]
  %s2 = inlined_call_operand.vmem [shape: f32[1,4], index: 2, kind: input, shape index: {}]
  %s3 = inlined_call_operand.vmem [shape: f32[2,256,4], index: 3, kind: output, shape index: {}]
  %s4 = sld [smem:[#allocation0]]
  $region45: #{tpu_custom_call.1} parent=0
    _
  %s6 = ssub.s32 1, %s4
  %s7 = scalar_select 0, %s6, %s4
  loop: start=0, step=1, limit=4
  $region2: #{tpu_custom_call.1} parent=0 // loop_pre_header
    _
  $region3: #{tpu_custom_call.1} parent=0 // loop_header
    %s9 = sphi 0, %s13
    %p10 = scmp.ge.s32.totalorder %s9, 4
    %s19 = sphi 0, %s21
    %s22 = sphi 0, %s19
    %s23 = sphi 0, %s22
    %s39 = sphi 0, %s23
    %s43 = sphi 0, %s43
    %s45 = sphi 0, %s43
    %s46 = sphi 0, %s45
    %s60 = sphi 0, %s46
    %s64 = sphi 0, %s64
    %s66 = sphi 0, %s64
    %s67 = sphi 0, %s66
    %s81 = sphi 0, %s67
    %s87 = sphi 0, %s89
    %s90 = sphi 0, %s87
    %s91 = sphi 0, %s90
    %s107 = sphi 0, %s91
  $region4: #{tpu_custom_call.1} parent=0 // loop_header_branch
    %12 = sbr.rel (%p10) target = $region8
  $region5: #{tpu_custom_call.1} parent=0 // loop_body
    %s14 = ssub.s32 %s9, 1
    %s15 = ssub.s32 %s9, 2
    %s16 = sadd.s32 %s9, 1
    %s17 = ssub.s32 %s9, %s16
    %p18 = scmp.eq.s32.totalorder %s17, 0
    %s20 = sadd.s32 %s19, 1
    %s21 = scalar_select %p18, %s19, %s20
    %p24 = pneg %p18
    %p25 = scmp.eq.s32.totalorder %s9, 1
    %p26 = por %p24, %p25
    %p27 = scmp.ne.s32.totalorder %s19, %s22
    %p28 = scmp.eq.s32.totalorder %s9, 0
    %p29 = por %p27, %p28
    %p30 = scmp.ne.s32.totalorder %s19, %s22
    %p31 = scmp.eq.s32.totalorder %s14, 1
    %p32 = por %p30, %p31
    %p33 = scmp.ne.s32.totalorder %s22, %s23
    %p34 = scmp.eq.s32.totalorder %s14, 0
    %p35 = por %p33, %p34
    %p36 = scmp.ne.s32.totalorder %s22, %s23
    %p37 = scmp.eq.s32.totalorder %s15, 1
    %p38 = por %p36, %p37
    %p40 = scmp.ne.s32.totalorder %s23, %s39
    %p41 = scmp.eq.s32.totalorder %s15, 0
    %p42 = por %p40, %p41
    %s44 = sadd.s32 %s43, 1
    %p47 = scmp.eq.s32.totalorder %s9, 1
    %p48 = scmp.ne.s32.totalorder %s43, %s45
    %p49 = scmp.eq.s32.totalorder %s9, 0
    %p50 = por %p48, %p49
    %p51 = scmp.ne.s32.totalorder %s43, %s45
    %p52 = scmp.eq.s32.totalorder %s14, 1
    %p53 = por %p51, %p52
    %p54 = scmp.ne.s32.totalorder %s45, %s46
    %p55 = scmp.eq.s32.totalorder %s14, 0
    %p56 = por %p54, %p55
    %p57 = scmp.ne.s32.totalorder %s45, %s46
    %p58 = scmp.eq.s32.totalorder %s15, 1
    %p59 = por %p57, %p58
    %p61 = scmp.ne.s32.totalorder %s46, %s60
    %p62 = scmp.eq.s32.totalorder %s15, 0
    %p63 = por %p61, %p62
    %s65 = sadd.s32 %s64, 1
    %p68 = scmp.eq.s32.totalorder %s9, 1
    %p69 = scmp.ne.s32.totalorder %s64, %s66
    %p70 = scmp.eq.s32.totalorder %s9, 0
    %p71 = por %p69, %p70
    %p72 = scmp.ne.s32.totalorder %s64, %s66
    %p73 = scmp.eq.s32.totalorder %s14, 1
    %p74 = por %p72, %p73
    %p75 = scmp.ne.s32.totalorder %s66, %s67
    %p76 = scmp.eq.s32.totalorder %s14, 0
    %p77 = por %p75, %p76
    %p78 = scmp.ne.s32.totalorder %s66, %s67
    %p79 = scmp.eq.s32.totalorder %s15, 1
    %p80 = por %p78, %p79
    %p82 = scmp.ne.s32.totalorder %s67, %s81
    %p83 = scmp.eq.s32.totalorder %s15, 0
    %p84 = por %p82, %p83
    %s85 = ssub.s32 %s9, %s16
    %p86 = scmp.eq.s32.totalorder %s85, 0
    %s88 = sadd.s32 %s87, 1
    %s89 = scalar_select %p86, %s87, %s88
    %p92 = pneg %p86
    %p93 = scmp.eq.s32.totalorder %s9, 1
    %p94 = por %p92, %p93
    %p95 = scmp.ne.s32.totalorder %s87, %s90
    %p96 = scmp.eq.s32.totalorder %s9, 0
    %p97 = por %p95, %p96
    %p98 = scmp.ne.s32.totalorder %s87, %s90
    %p99 = scmp.eq.s32.totalorder %s14, 1
    %p100 = por %p98, %p99
    %p101 = scmp.ne.s32.totalorder %s90, %s91
    %p102 = scmp.eq.s32.totalorder %s14, 0
    %p103 = por %p101, %p102
    %p104 = scmp.ne.s32.totalorder %s90, %s91
    %p105 = scmp.eq.s32.totalorder %s15, 1
    %p106 = por %p104, %p105
    %p108 = scmp.ne.s32.totalorder %s91, %s107
    %p109 = scmp.eq.s32.totalorder %s15, 0
    %p110 = por %p108, %p109
    %p111 = scmp.le.s32.totalorder 1, %s9
    %p112 = scmp.lt.s32.totalorder %s9, 3
    %p113 = pnand %p111, %p112
    %p114 = pneg %p113
    // Predicated region
    $region9: #{tpu_custom_call.1} parent=5 // pred_check
      _
    $region10: #{tpu_custom_call.1} parent=5 // pred_check_branch
      %116 = sbr.rel (%p113) target = $region12
    $region11: #{tpu_custom_call.1} parent=5 // pred_region
      %s117 = ssub.s32 %s9, 1
      // Predicated region
      $region13: #{tpu_custom_call.1} parent=11 // pred_check
        %p118 = pneg %p56
      $region14: #{tpu_custom_call.1} parent=11 // pred_check_branch
        %120 = sbr.rel (%p118) target = $region16
      $region15: #{tpu_custom_call.1} parent=11 // pred_region
        _
      $region16: #{tpu_custom_call.1} parent=11 // pred_fallthru
        _
      // Predicated region
      $region17: #{tpu_custom_call.1} parent=11 // pred_check
        %p121 = pneg %p77
      $region18: #{tpu_custom_call.1} parent=11 // pred_check_branch
        %123 = sbr.rel (%p121) target = $region20
      $region19: #{tpu_custom_call.1} parent=11 // pred_region
        _
      $region20: #{tpu_custom_call.1} parent=11 // pred_fallthru
        _
    $region12: #{tpu_custom_call.1} parent=5 // pred_fallthru
      _
    %p124 = scmp.lt.s32.totalorder %s9, 2
    // Predicated region
    $region21: #{tpu_custom_call.1} parent=5 // pred_check
      %p125 = pneg %p124
    $region22: #{tpu_custom_call.1} parent=5 // pred_check_branch
      %127 = sbr.rel (%p125) target = $region24
    $region23: #{tpu_custom_call.1} parent=5 // pred_region
      // Predicated region
      $region25: #{tpu_custom_call.1} parent=23 // pred_check
        %p128 = pneg %p29
      $region26: #{tpu_custom_call.1} parent=23 // pred_check_branch
        %130 = sbr.rel (%p128) target = $region28
      $region27: #{tpu_custom_call.1} parent=23 // pred_region
        %p131 = scmp.lt.s32.totalorder %s9, 1
        %s132 = scalar_select %p131, %s9, 1
        %s133 = smul.addr %s132, 54
        %s134 = smul.addr %s133, 8
        %s135 = scalar_lea.vmem %s0, %s134
      $region28: #{tpu_custom_call.1} parent=23 // pred_fallthru
        _
    $region24: #{tpu_custom_call.1} parent=5 // pred_fallthru
      _
    %p136 = scmp.le.s32.totalorder 1, %s9
    %p137 = scmp.lt.s32.totalorder %s9, 3
    %p138 = pnand %p136, %p137
    %p139 = pneg %p138
    // Predicated region
    $region29: #{tpu_custom_call.1} parent=5 // pred_check
      _
    $region30: #{tpu_custom_call.1} parent=5 // pred_check_branch
      %141 = sbr.rel (%p138) target = $region32
    $region31: #{tpu_custom_call.1} parent=5 // pred_region
      %s142 = ssub.s32 %s9, 1
      %p143 = scmp.lt.s32.totalorder %s14, 1
      %s144 = scalar_select %p143, %s14, 1
      %s145 = smul.addr %s144, 54
      %s146 = smul.addr %s145, 8
      %s147 = scalar_lea.vmem %s0, %s146
      %p148 = pneg %p35
      %p149 = pneg %p32
      %p150 = pneg %p56
      %p151 = pneg %p53
      %p152 = pneg %p77
      %p153 = pneg %p74
      %p154 = pneg %p103
      %p155 = pneg %p100
      %p156 = scmp.lt.s32.totalorder %s14, 1
      %s157 = scalar_select %p156, %s14, 1
      %s158 = smul.addr %s157, 32
      %s159 = smul.addr %s158, 8
      %s160 = scalar_lea.vmem %s3, %s159
      %p161 = scmp.lt.s32.totalorder %s14, 1
      %s162 = scalar_select %p161, %s14, 1
      %s163 = smul.addr %s162, 54
      %s164 = smul.addr %s163, 8
      %s165 = scalar_lea.vmem %s0, %s164
      %p166 = scmp.lt.s32.totalorder %s14, 1
      %s167 = scalar_select %p166, %s14, 1
      %s168 = smul.addr %s167, 32
      %s169 = smul.addr %s168, 8
      %s170 = scalar_lea.vmem %s3, %s169
      %v171 = vld [vmem:[%s165] sm:$0xff]
      %v172 = vld [vmem:[%s165 + $0x8] sm:$0xff]
      %v173 = vld [vmem:[%s165 + $0x18] sm:$0xff]
      %v174 = vld [vmem:[%s165 + $0x20] sm:$0xff]
      %v175 = vld [vmem:[%s165 + $0x30] sm:$0xff]
      %v176 = vld [vmem:[%s165 + $0x38] sm:$0xff]
      %v177 = vld [vmem:[%s165 + $0x48] sm:$0xff]
      %v178 = vld [vmem:[%s165 + $0x50] sm:$0xff]
      %v179 = vld [vmem:[%s165 + $0x60] sm:$0xff]
      %v180 = vld [vmem:[%s165 + $0x68] sm:$0xff]
      %v181 = vld [vmem:[%s165 + $0x78] sm:$0xff]
      %v182 = vld [vmem:[%s165 + $0x80] sm:$0xff]
      %v183 = vld [vmem:[%s165 + $0x90] sm:$0xff]
      %v184 = vld [vmem:[%s165 + $0x98] sm:$0xff]
      %v185 = vld [vmem:[%s165 + $0xa8] sm:$0xff]
      %v186 = vld [vmem:[%s165 + $0xb0] sm:$0xff]
      %v187 = vld [vmem:[%s165 + $0xc0] sm:$0xff]
      %v188 = vld [vmem:[%s165 + $0xc8] sm:$0xff]
      %v189 = vld [vmem:[%s165 + $0xd8] sm:$0xff]
      %v190 = vld [vmem:[%s165 + $0xe0] sm:$0xff]
      %v191 = vld [vmem:[%s165 + $0xf0] sm:$0xff]
      %v192 = vld [vmem:[%s165 + $0xf8] sm:$0xff]
      %v193 = vld [vmem:[%s165 + $0x108] sm:$0xff]
      %v194 = vld [vmem:[%s165 + $0x110] sm:$0xff]
      %v195 = vld [vmem:[%s165 + $0x120] sm:$0xff]
      %v196 = vld [vmem:[%s165 + $0x128] sm:$0xff]
      %v197 = vld [vmem:[%s165 + $0x138] sm:$0xff]
      %v198 = vld [vmem:[%s165 + $0x140] sm:$0xff]
      %v199 = vld [vmem:[%s165 + $0x150] sm:$0xff]
      %v200 = vld [vmem:[%s165 + $0x158] sm:$0xff]
      %v201 = vld [vmem:[%s165 + $0x168] sm:$0xff]
      %v202 = vld [vmem:[%s165 + $0x170] sm:$0xff]
      %v203 = vld [vmem:[%s165 + $0x180] sm:$0xff]
      %v204 = vld [vmem:[%s165 + $0x188] sm:$0xff]
      %v205 = vld [vmem:[%s165 + $0x198] sm:$0xff]
      %v206 = vld [vmem:[%s165 + $0x1a0] sm:$0xff]
      %vm207 = vcmask 31744
      %208 = vst.msk [vmem:[#allocation2] sm:$0xff] %vm207, %v171
      %209 = vst.msk [vmem:[#allocation2 + $0x8] sm:$0xff] %vm207, %v172
      %210 = vst.msk [vmem:[#allocation2 + $0x10] sm:$0xff] %vm207, %v173
      %211 = vst.msk [vmem:[#allocation2 + $0x18] sm:$0xff] %vm207, %v174
      %212 = vst.msk [vmem:[#allocation2 + $0x20] sm:$0xff] %vm207, %v175
      %213 = vst.msk [vmem:[#allocation2 + $0x28] sm:$0xff] %vm207, %v176
      %214 = vst.msk [vmem:[#allocation2 + $0x30] sm:$0xff] %vm207, %v177
      %215 = vst.msk [vmem:[#allocation2 + $0x38] sm:$0xff] %vm207, %v178
      %216 = vst.msk [vmem:[#allocation2 + $0x40] sm:$0xff] %vm207, %v179
      %217 = vst.msk [vmem:[#allocation2 + $0x48] sm:$0xff] %vm207, %v180
      %218 = vst.msk [vmem:[#allocation2 + $0x50] sm:$0xff] %vm207, %v181
      %219 = vst.msk [vmem:[#allocation2 + $0x58] sm:$0xff] %vm207, %v182
      %220 = vst.msk [vmem:[#allocation2 + $0x60] sm:$0xff] %vm207, %v183
      %221 = vst.msk [vmem:[#allocation2 + $0x68] sm:$0xff] %vm207, %v184
      %222 = vst.msk [vmem:[#allocation2 + $0x70] sm:$0xff] %vm207, %v185
      %223 = vst.msk [vmem:[#allocation2 + $0x78] sm:$0xff] %vm207, %v186
      %224 = vst.msk [vmem:[#allocation2 + $0x80] sm:$0xff] %vm207, %v187
      %225 = vst.msk [vmem:[#allocation2 + $0x88] sm:$0xff] %vm207, %v188
      %226 = vst.msk [vmem:[#allocation2 + $0x90] sm:$0xff] %vm207, %v189
      %227 = vst.msk [vmem:[#allocation2 + $0x98] sm:$0xff] %vm207, %v190
      %228 = vst.msk [vmem:[#allocation2 + $0xa0] sm:$0xff] %vm207, %v191
      %229 = vst.msk [vmem:[#allocation2 + $0xa8] sm:$0xff] %vm207, %v192
      %230 = vst.msk [vmem:[#allocation2 + $0xb0] sm:$0xff] %vm207, %v193
      %231 = vst.msk [vmem:[#allocation2 + $0xb8] sm:$0xff] %vm207, %v194
      %232 = vst.msk [vmem:[#allocation2 + $0xc0] sm:$0xff] %vm207, %v195
      %233 = vst.msk [vmem:[#allocation2 + $0xc8] sm:$0xff] %vm207, %v196
      %234 = vst.msk [vmem:[#allocation2 + $0xd0] sm:$0xff] %vm207, %v197
      %235 = vst.msk [vmem:[#allocation2 + $0xd8] sm:$0xff] %vm207, %v198
      %236 = vst.msk [vmem:[#allocation2 + $0xe0] sm:$0xff] %vm207, %v199
      %237 = vst.msk [vmem:[#allocation2 + $0xe8] sm:$0xff] %vm207, %v200
      %238 = vst.msk [vmem:[#allocation2 + $0xf0] sm:$0xff] %vm207, %v201
      %239 = vst.msk [vmem:[#allocation2 + $0xf8] sm:$0xff] %vm207, %v202
      %240 = vst.msk [vmem:[#allocation2 + $0x100] sm:$0xff] %vm207, %v203
      %241 = vst.msk [vmem:[#allocation2 + $0x108] sm:$0xff] %vm207, %v204
      %242 = vst.msk [vmem:[#allocation2 + $0x110] sm:$0xff] %vm207, %v205
      %243 = vst.msk [vmem:[#allocation2 + $0x118] sm:$0xff] %vm207, %v206
      %v244 = vld [vmem:[%s165 + $0x1] sm:$0xff]
      %v245 = vld [vmem:[%s165 + $0x9] sm:$0xff]
      %v246 = vld [vmem:[%s165 + $0x19] sm:$0xff]
      %v247 = vld [vmem:[%s165 + $0x21] sm:$0xff]
      %v248 = vld [vmem:[%s165 + $0x31] sm:$0xff]
      %v249 = vld [vmem:[%s165 + $0x39] sm:$0xff]
      %v250 = vld [vmem:[%s165 + $0x49] sm:$0xff]
      %v251 = vld [vmem:[%s165 + $0x51] sm:$0xff]
      %v252 = vld [vmem:[%s165 + $0x61] sm:$0xff]
      %v253 = vld [vmem:[%s165 + $0x69] sm:$0xff]
      %v254 = vld [vmem:[%s165 + $0x79] sm:$0xff]
      %v255 = vld [vmem:[%s165 + $0x81] sm:$0xff]
      %v256 = vld [vmem:[%s165 + $0x91] sm:$0xff]
      %v257 = vld [vmem:[%s165 + $0x99] sm:$0xff]
      %v258 = vld [vmem:[%s165 + $0xa9] sm:$0xff]
      %v259 = vld [vmem:[%s165 + $0xb1] sm:$0xff]
      %v260 = vld [vmem:[%s165 + $0xc1] sm:$0xff]
      %v261 = vld [vmem:[%s165 + $0xc9] sm:$0xff]
      %v262 = vld [vmem:[%s165 + $0xd9] sm:$0xff]
      %v263 = vld [vmem:[%s165 + $0xe1] sm:$0xff]
      %v264 = vld [vmem:[%s165 + $0xf1] sm:$0xff]
      %v265 = vld [vmem:[%s165 + $0xf9] sm:$0xff]
      %v266 = vld [vmem:[%s165 + $0x109] sm:$0xff]
      %v267 = vld [vmem:[%s165 + $0x111] sm:$0xff]
      %v268 = vld [vmem:[%s165 + $0x121] sm:$0xff]
      %v269 = vld [vmem:[%s165 + $0x129] sm:$0xff]
      %v270 = vld [vmem:[%s165 + $0x139] sm:$0xff]
      %v271 = vld [vmem:[%s165 + $0x141] sm:$0xff]
      %v272 = vld [vmem:[%s165 + $0x151] sm:$0xff]
      %v273 = vld [vmem:[%s165 + $0x159] sm:$0xff]
      %v274 = vld [vmem:[%s165 + $0x169] sm:$0xff]
      %v275 = vld [vmem:[%s165 + $0x171] sm:$0xff]
      %v276 = vld [vmem:[%s165 + $0x181] sm:$0xff]
      %v277 = vld [vmem:[%s165 + $0x189] sm:$0xff]
      %v278 = vld [vmem:[%s165 + $0x199] sm:$0xff]
      %v279 = vld [vmem:[%s165 + $0x1a1] sm:$0xff]
      %316 = vrot.lane.b32.xlu0 %v244, 4
      %v317 = vpop.permute.xlu0 %316
      %318 = vrot.lane.b32.xlu0 %v245, 4
      %v319 = vpop.permute.xlu0 %318
      %320 = vrot.lane.b32.xlu0 %v246, 4
      %v321 = vpop.permute.xlu0 %320
      %322 = vrot.lane.b32.xlu0 %v247, 4
      %v323 = vpop.permute.xlu0 %322
      %324 = vrot.lane.b32.xlu0 %v248, 4
      %v325 = vpop.permute.xlu0 %324
      %326 = vrot.lane.b32.xlu0 %v249, 4
      %v327 = vpop.permute.xlu0 %326
      %328 = vrot.lane.b32.xlu0 %v250, 4
      %v329 = vpop.permute.xlu0 %328
      %330 = vrot.lane.b32.xlu0 %v251, 4
      %v331 = vpop.permute.xlu0 %330
      %332 = vrot.lane.b32.xlu0 %v252, 4
      %v333 = vpop.permute.xlu0 %332
      %334 = vrot.lane.b32.xlu0 %v253, 4
      %v335 = vpop.permute.xlu0 %334
      %336 = vrot.lane.b32.xlu0 %v254, 4
      %v337 = vpop.permute.xlu0 %336
      %338 = vrot.lane.b32.xlu0 %v255, 4
      %v339 = vpop.permute.xlu0 %338
      %340 = vrot.lane.b32.xlu0 %v256, 4
      %v341 = vpop.permute.xlu0 %340
      %342 = vrot.lane.b32.xlu0 %v257, 4
      %v343 = vpop.permute.xlu0 %342
      %344 = vrot.lane.b32.xlu0 %v258, 4
      %v345 = vpop.permute.xlu0 %344
      %346 = vrot.lane.b32.xlu0 %v259, 4
      %v347 = vpop.permute.xlu0 %346
      %348 = vrot.lane.b32.xlu0 %v260, 4
      %v349 = vpop.permute.xlu0 %348
      %350 = vrot.lane.b32.xlu0 %v261, 4
      %v351 = vpop.permute.xlu0 %350
      %352 = vrot.lane.b32.xlu0 %v262, 4
      %v353 = vpop.permute.xlu0 %352
      %354 = vrot.lane.b32.xlu0 %v263, 4
      %v355 = vpop.permute.xlu0 %354
      %356 = vrot.lane.b32.xlu0 %v264, 4
      %v357 = vpop.permute.xlu0 %356
      %358 = vrot.lane.b32.xlu0 %v265, 4
      %v359 = vpop.permute.xlu0 %358
      %360 = vrot.lane.b32.xlu0 %v266, 4
      %v361 = vpop.permute.xlu0 %360
      %362 = vrot.lane.b32.xlu0 %v267, 4
      %v363 = vpop.permute.xlu0 %362
      %364 = vrot.lane.b32.xlu0 %v268, 4
      %v365 = vpop.permute.xlu0 %364
      %366 = vrot.lane.b32.xlu0 %v269, 4
      %v367 = vpop.permute.xlu0 %366
      %368 = vrot.lane.b32.xlu0 %v270, 4
      %v369 = vpop.permute.xlu0 %368
      %370 = vrot.lane.b32.xlu0 %v271, 4
      %v371 = vpop.permute.xlu0 %370
      %372 = vrot.lane.b32.xlu0 %v272, 4
      %v373 = vpop.permute.xlu0 %372
      %374 = vrot.lane.b32.xlu0 %v273, 4
      %v375 = vpop.permute.xlu0 %374
      %376 = vrot.lane.b32.xlu0 %v274, 4
      %v377 = vpop.permute.xlu0 %376
      %378 = vrot.lane.b32.xlu0 %v275, 4
      %v379 = vpop.permute.xlu0 %378
      %380 = vrot.lane.b32.xlu0 %v276, 4
      %v381 = vpop.permute.xlu0 %380
      %382 = vrot.lane.b32.xlu0 %v277, 4
      %v383 = vpop.permute.xlu0 %382
      %384 = vrot.lane.b32.xlu0 %v278, 4
      %v385 = vpop.permute.xlu0 %384
      %386 = vrot.lane.b32.xlu0 %v279, 4
      %v387 = vpop.permute.xlu0 %386
      %vm424 = vcmask 64544
      %425 = vst.msk [vmem:[#allocation2] sm:$0xff] %vm424, %v317
      %426 = vst.msk [vmem:[#allocation2 + $0x8] sm:$0xff] %vm424, %v319
      %427 = vst.msk [vmem:[#allocation2 + $0x10] sm:$0xff] %vm424, %v321
      %428 = vst.msk [vmem:[#allocation2 + $0x18] sm:$0xff] %vm424, %v323
      %429 = vst.msk [vmem:[#allocation2 + $0x20] sm:$0xff] %vm424, %v325
      %430 = vst.msk [vmem:[#allocation2 + $0x28] sm:$0xff] %vm424, %v327
      %431 = vst.msk [vmem:[#allocation2 + $0x30] sm:$0xff] %vm424, %v329
      %432 = vst.msk [vmem:[#allocation2 + $0x38] sm:$0xff] %vm424, %v331
      %433 = vst.msk [vmem:[#allocation2 + $0x40] sm:$0xff] %vm424, %v333
      %434 = vst.msk [vmem:[#allocation2 + $0x48] sm:$0xff] %vm424, %v335
      %435 = vst.msk [vmem:[#allocation2 + $0x50] sm:$0xff] %vm424, %v337
      %436 = vst.msk [vmem:[#allocation2 + $0x58] sm:$0xff] %vm424, %v339
      %437 = vst.msk [vmem:[#allocation2 + $0x60] sm:$0xff] %vm424, %v341
      %438 = vst.msk [vmem:[#allocation2 + $0x68] sm:$0xff] %vm424, %v343
      %439 = vst.msk [vmem:[#allocation2 + $0x70] sm:$0xff] %vm424, %v345
      %440 = vst.msk [vmem:[#allocation2 + $0x78] sm:$0xff] %vm424, %v347
      %441 = vst.msk [vmem:[#allocation2 + $0x80] sm:$0xff] %vm424, %v349
      %442 = vst.msk [vmem:[#allocation2 + $0x88] sm:$0xff] %vm424, %v351
      %443 = vst.msk [vmem:[#allocation2 + $0x90] sm:$0xff] %vm424, %v353
      %444 = vst.msk [vmem:[#allocation2 + $0x98] sm:$0xff] %vm424, %v355
      %445 = vst.msk [vmem:[#allocation2 + $0xa0] sm:$0xff] %vm424, %v357
      %446 = vst.msk [vmem:[#allocation2 + $0xa8] sm:$0xff] %vm424, %v359
      %447 = vst.msk [vmem:[#allocation2 + $0xb0] sm:$0xff] %vm424, %v361
      %448 = vst.msk [vmem:[#allocation2 + $0xb8] sm:$0xff] %vm424, %v363
      %449 = vst.msk [vmem:[#allocation2 + $0xc0] sm:$0xff] %vm424, %v365
      %450 = vst.msk [vmem:[#allocation2 + $0xc8] sm:$0xff] %vm424, %v367
      %451 = vst.msk [vmem:[#allocation2 + $0xd0] sm:$0xff] %vm424, %v369
      %452 = vst.msk [vmem:[#allocation2 + $0xd8] sm:$0xff] %vm424, %v371
      %453 = vst.msk [vmem:[#allocation2 + $0xe0] sm:$0xff] %vm424, %v373
      %454 = vst.msk [vmem:[#allocation2 + $0xe8] sm:$0xff] %vm424, %v375
      %455 = vst.msk [vmem:[#allocation2 + $0xf0] sm:$0xff] %vm424, %v377
      %456 = vst.msk [vmem:[#allocation2 + $0xf8] sm:$0xff] %vm424, %v379
      %457 = vst.msk [vmem:[#allocation2 + $0x100] sm:$0xff] %vm424, %v381
      %458 = vst.msk [vmem:[#allocation2 + $0x108] sm:$0xff] %vm424, %v383
      %459 = vst.msk [vmem:[#allocation2 + $0x110] sm:$0xff] %vm424, %v385
      %460 = vst.msk [vmem:[#allocation2 + $0x118] sm:$0xff] %vm424, %v387
      %v461 = vld [vmem:[%s165 + $0x2] sm:$0xff]
      %v462 = vld [vmem:[%s165 + $0xa] sm:$0xff]
      %v463 = vld [vmem:[%s165 + $0x1a] sm:$0xff]
      %v464 = vld [vmem:[%s165 + $0x22] sm:$0xff]
      %v465 = vld [vmem:[%s165 + $0x32] sm:$0xff]
      %v466 = vld [vmem:[%s165 + $0x3a] sm:$0xff]
      %v467 = vld [vmem:[%s165 + $0x4a] sm:$0xff]
      %v468 = vld [vmem:[%s165 + $0x52] sm:$0xff]
      %v469 = vld [vmem:[%s165 + $0x62] sm:$0xff]
      %v470 = vld [vmem:[%s165 + $0x6a] sm:$0xff]
      %v471 = vld [vmem:[%s165 + $0x7a] sm:$0xff]
      %v472 = vld [vmem:[%s165 + $0x82] sm:$0xff]
      %v473 = vld [vmem:[%s165 + $0x92] sm:$0xff]
      %v474 = vld [vmem:[%s165 + $0x9a] sm:$0xff]
      %v475 = vld [vmem:[%s165 + $0xaa] sm:$0xff]
      %v476 = vld [vmem:[%s165 + $0xb2] sm:$0xff]
      %v477 = vld [vmem:[%s165 + $0xc2] sm:$0xff]
      %v478 = vld [vmem:[%s165 + $0xca] sm:$0xff]
      %v479 = vld [vmem:[%s165 + $0xda] sm:$0xff]
      %v480 = vld [vmem:[%s165 + $0xe2] sm:$0xff]
      %v481 = vld [vmem:[%s165 + $0xf2] sm:$0xff]
      %v482 = vld [vmem:[%s165 + $0xfa] sm:$0xff]
      %v483 = vld [vmem:[%s165 + $0x10a] sm:$0xff]
      %v484 = vld [vmem:[%s165 + $0x112] sm:$0xff]
      %v485 = vld [vmem:[%s165 + $0x122] sm:$0xff]
      %v486 = vld [vmem:[%s165 + $0x12a] sm:$0xff]
      %v487 = vld [vmem:[%s165 + $0x13a] sm:$0xff]
      %v488 = vld [vmem:[%s165 + $0x142] sm:$0xff]
      %v489 = vld [vmem:[%s165 + $0x152] sm:$0xff]
      %v490 = vld [vmem:[%s165 + $0x15a] sm:$0xff]
      %v491 = vld [vmem:[%s165 + $0x16a] sm:$0xff]
      %v492 = vld [vmem:[%s165 + $0x172] sm:$0xff]
      %v493 = vld [vmem:[%s165 + $0x182] sm:$0xff]
      %v494 = vld [vmem:[%s165 + $0x18a] sm:$0xff]
      %v495 = vld [vmem:[%s165 + $0x19a] sm:$0xff]
      %v496 = vld [vmem:[%s165 + $0x1a2] sm:$0xff]
      %533 = vrot.lane.b32.xlu0 %v461, 8
      %v534 = vpop.permute.xlu0 %533
      %535 = vrot.lane.b32.xlu0 %v462, 8
      %v536 = vpop.permute.xlu0 %535
      %537 = vrot.lane.b32.xlu0 %v463, 8
      %v538 = vpop.permute.xlu0 %537
      %539 = vrot.lane.b32.xlu0 %v464, 8
      %v540 = vpop.permute.xlu0 %539
      %541 = vrot.lane.b32.xlu0 %v465, 8
      %v542 = vpop.permute.xlu0 %541
      %543 = vrot.lane.b32.xlu0 %v466, 8
      %v544 = vpop.permute.xlu0 %543
      %545 = vrot.lane.b32.xlu0 %v467, 8
      %v546 = vpop.permute.xlu0 %545
      %547 = vrot.lane.b32.xlu0 %v468, 8
      %v548 = vpop.permute.xlu0 %547
      %549 = vrot.lane.b32.xlu0 %v469, 8
      %v550 = vpop.permute.xlu0 %549
      %551 = vrot.lane.b32.xlu0 %v470, 8
      %v552 = vpop.permute.xlu0 %551
      %553 = vrot.lane.b32.xlu0 %v471, 8
      %v554 = vpop.permute.xlu0 %553
      %555 = vrot.lane.b32.xlu0 %v472, 8
      %v556 = vpop.permute.xlu0 %555
      %557 = vrot.lane.b32.xlu0 %v473, 8
      %v558 = vpop.permute.xlu0 %557
      %559 = vrot.lane.b32.xlu0 %v474, 8
      %v560 = vpop.permute.xlu0 %559
      %561 = vrot.lane.b32.xlu0 %v475, 8
      %v562 = vpop.permute.xlu0 %561
      %563 = vrot.lane.b32.xlu0 %v476, 8
      %v564 = vpop.permute.xlu0 %563
      %565 = vrot.lane.b32.xlu0 %v477, 8
      %v566 = vpop.permute.xlu0 %565
      %567 = vrot.lane.b32.xlu0 %v478, 8
      %v568 = vpop.permute.xlu0 %567
      %569 = vrot.lane.b32.xlu0 %v479, 8
      %v570 = vpop.permute.xlu0 %569
      %571 = vrot.lane.b32.xlu0 %v480, 8
      %v572 = vpop.permute.xlu0 %571
      %573 = vrot.lane.b32.xlu0 %v481, 8
      %v574 = vpop.permute.xlu0 %573
      %575 = vrot.lane.b32.xlu0 %v482, 8
      %v576 = vpop.permute.xlu0 %575
      %577 = vrot.lane.b32.xlu0 %v483, 8
      %v578 = vpop.permute.xlu0 %577
      %579 = vrot.lane.b32.xlu0 %v484, 8
      %v580 = vpop.permute.xlu0 %579
      %581 = vrot.lane.b32.xlu0 %v485, 8
      %v582 = vpop.permute.xlu0 %581
      %583 = vrot.lane.b32.xlu0 %v486, 8
      %v584 = vpop.permute.xlu0 %583
      %585 = vrot.lane.b32.xlu0 %v487, 8
      %v586 = vpop.permute.xlu0 %585
      %587 = vrot.lane.b32.xlu0 %v488, 8
      %v588 = vpop.permute.xlu0 %587
      %589 = vrot.lane.b32.xlu0 %v489, 8
      %v590 = vpop.permute.xlu0 %589
      %591 = vrot.lane.b32.xlu0 %v490, 8
      %v592 = vpop.permute.xlu0 %591
      %593 = vrot.lane.b32.xlu0 %v491, 8
      %v594 = vpop.permute.xlu0 %593
      %595 = vrot.lane.b32.xlu0 %v492, 8
      %v596 = vpop.permute.xlu0 %595
      %597 = vrot.lane.b32.xlu0 %v493, 8
      %v598 = vpop.permute.xlu0 %597
      %599 = vrot.lane.b32.xlu0 %v494, 8
      %v600 = vpop.permute.xlu0 %599
      %601 = vrot.lane.b32.xlu0 %v495, 8
      %v602 = vpop.permute.xlu0 %601
      %603 = vrot.lane.b32.xlu0 %v496, 8
      %v604 = vpop.permute.xlu0 %603
      %vm641 = vcmask 97344
      %642 = vst.msk [vmem:[#allocation2] sm:$0xff] %vm641, %v534
      %643 = vst.msk [vmem:[#allocation2 + $0x8] sm:$0xff] %vm641, %v536
      %644 = vst.msk [vmem:[#allocation2 + $0x10] sm:$0xff] %vm641, %v538
      %645 = vst.msk [vmem:[#allocation2 + $0x18] sm:$0xff] %vm641, %v540
      %646 = vst.msk [vmem:[#allocation2 + $0x20] sm:$0xff] %vm641, %v542
      %647 = vst.msk [vmem:[#allocation2 + $0x28] sm:$0xff] %vm641, %v544
      %648 = vst.msk [vmem:[#allocation2 + $0x30] sm:$0xff] %vm641, %v546
      %649 = vst.msk [vmem:[#allocation2 + $0x38] sm:$0xff] %vm641, %v548
      %650 = vst.msk [vmem:[#allocation2 + $0x40] sm:$0xff] %vm641, %v550
      %651 = vst.msk [vmem:[#allocation2 + $0x48] sm:$0xff] %vm641, %v552
      %652 = vst.msk [vmem:[#allocation2 + $0x50] sm:$0xff] %vm641, %v554
      %653 = vst.msk [vmem:[#allocation2 + $0x58] sm:$0xff] %vm641, %v556
      %654 = vst.msk [vmem:[#allocation2 + $0x60] sm:$0xff] %vm641, %v558
      %655 = vst.msk [vmem:[#allocation2 + $0x68] sm:$0xff] %vm641, %v560
      %656 = vst.msk [vmem:[#allocation2 + $0x70] sm:$0xff] %vm641, %v562
      %657 = vst.msk [vmem:[#allocation2 + $0x78] sm:$0xff] %vm641, %v564
      %658 = vst.msk [vmem:[#allocation2 + $0x80] sm:$0xff] %vm641, %v566
      %659 = vst.msk [vmem:[#allocation2 + $0x88] sm:$0xff] %vm641, %v568
      %660 = vst.msk [vmem:[#allocation2 + $0x90] sm:$0xff] %vm641, %v570
      %661 = vst.msk [vmem:[#allocation2 + $0x98] sm:$0xff] %vm641, %v572
      %662 = vst.msk [vmem:[#allocation2 + $0xa0] sm:$0xff] %vm641, %v574
      %663 = vst.msk [vmem:[#allocation2 + $0xa8] sm:$0xff] %vm641, %v576
      %664 = vst.msk [vmem:[#allocation2 + $0xb0] sm:$0xff] %vm641, %v578
      %665 = vst.msk [vmem:[#allocation2 + $0xb8] sm:$0xff] %vm641, %v580
      %666 = vst.msk [vmem:[#allocation2 + $0xc0] sm:$0xff] %vm641, %v582
      %667 = vst.msk [vmem:[#allocation2 + $0xc8] sm:$0xff] %vm641, %v584
      %668 = vst.msk [vmem:[#allocation2 + $0xd0] sm:$0xff] %vm641, %v586
      %669 = vst.msk [vmem:[#allocation2 + $0xd8] sm:$0xff] %vm641, %v588
      %670 = vst.msk [vmem:[#allocation2 + $0xe0] sm:$0xff] %vm641, %v590
      %671 = vst.msk [vmem:[#allocation2 + $0xe8] sm:$0xff] %vm641, %v592
      %672 = vst.msk [vmem:[#allocation2 + $0xf0] sm:$0xff] %vm641, %v594
      %673 = vst.msk [vmem:[#allocation2 + $0xf8] sm:$0xff] %vm641, %v596
      %674 = vst.msk [vmem:[#allocation2 + $0x100] sm:$0xff] %vm641, %v598
      %675 = vst.msk [vmem:[#allocation2 + $0x108] sm:$0xff] %vm641, %v600
      %676 = vst.msk [vmem:[#allocation2 + $0x110] sm:$0xff] %vm641, %v602
      %677 = vst.msk [vmem:[#allocation2 + $0x118] sm:$0xff] %vm641, %v604
      %v678 = vld [vmem:[#allocation2] sm:$0xff]
      %v679 = vld [vmem:[#allocation2 + $0x8] sm:$0xff]
      %v680 = vld [vmem:[#allocation2 + $0x10] sm:$0xff]
      %v681 = vld [vmem:[#allocation2 + $0x18] sm:$0xff]
      %v682 = vld [vmem:[#allocation2 + $0x20] sm:$0xff]
      %v683 = vld [vmem:[#allocation2 + $0x28] sm:$0xff]
      %v684 = vld [vmem:[#allocation2 + $0x30] sm:$0xff]
      %v685 = vld [vmem:[#allocation2 + $0x38] sm:$0xff]
      %v686 = vld [vmem:[#allocation2 + $0x40] sm:$0xff]
      %v687 = vld [vmem:[#allocation2 + $0x48] sm:$0xff]
      %v688 = vld [vmem:[#allocation2 + $0x50] sm:$0xff]
      %v689 = vld [vmem:[#allocation2 + $0x58] sm:$0xff]
      %v690 = vld [vmem:[#allocation2 + $0x60] sm:$0xff]
      %v691 = vld [vmem:[#allocation2 + $0x68] sm:$0xff]
      %v692 = vld [vmem:[#allocation2 + $0x70] sm:$0xff]
      %v693 = vld [vmem:[#allocation2 + $0x78] sm:$0xff]
      %v694 = vld [vmem:[#allocation2 + $0x80] sm:$0xff]
      %v695 = vld [vmem:[#allocation2 + $0x88] sm:$0xff]
      %v696 = vld [vmem:[#allocation2 + $0x90] sm:$0xff]
      %v697 = vld [vmem:[#allocation2 + $0x98] sm:$0xff]
      %v698 = vld [vmem:[#allocation2 + $0xa0] sm:$0xff]
      %v699 = vld [vmem:[#allocation2 + $0xa8] sm:$0xff]
      %v700 = vld [vmem:[#allocation2 + $0xb0] sm:$0xff]
      %v701 = vld [vmem:[#allocation2 + $0xb8] sm:$0xff]
      %v702 = vld [vmem:[#allocation2 + $0xc0] sm:$0xff]
      %v703 = vld [vmem:[#allocation2 + $0xc8] sm:$0xff]
      %v704 = vld [vmem:[#allocation2 + $0xd0] sm:$0xff]
      %v705 = vld [vmem:[#allocation2 + $0xd8] sm:$0xff]
      %v706 = vld [vmem:[#allocation2 + $0xe0] sm:$0xff]
      %v707 = vld [vmem:[#allocation2 + $0xe8] sm:$0xff]
      %v708 = vld [vmem:[#allocation2 + $0xf0] sm:$0xff]
      %v709 = vld [vmem:[#allocation2 + $0xf8] sm:$0xff]
      %v710 = vld [vmem:[%s1] sm:$0xff]
      %v711 = vld [vmem:[%s1 + $0x8] sm:$0xf]
      %vm712 = vcmask 97280
      %v714 = vsel %vm712, %v678, 0
      %v717 = vsel %vm712, %v679, 0
      %v720 = vsel %vm712, %v680, 0
      %v723 = vsel %vm712, %v681, 0
      %v726 = vsel %vm712, %v682, 0
      %v729 = vsel %vm712, %v683, 0
      %v732 = vsel %vm712, %v684, 0
      %v735 = vsel %vm712, %v685, 0
      %v738 = vsel %vm712, %v686, 0
      %v741 = vsel %vm712, %v687, 0
      %v744 = vsel %vm712, %v688, 0
      %v747 = vsel %vm712, %v689, 0
      %v750 = vsel %vm712, %v690, 0
      %v753 = vsel %vm712, %v691, 0
      %v756 = vsel %vm712, %v692, 0
      %v759 = vsel %vm712, %v693, 0
      %v762 = vsel %vm712, %v694, 0
      %v765 = vsel %vm712, %v695, 0
      %v768 = vsel %vm712, %v696, 0
      %v771 = vsel %vm712, %v697, 0
      %v774 = vsel %vm712, %v698, 0
      %v777 = vsel %vm712, %v699, 0
      %v780 = vsel %vm712, %v700, 0
      %v783 = vsel %vm712, %v701, 0
      %v786 = vsel %vm712, %v702, 0
      %v789 = vsel %vm712, %v703, 0
      %v792 = vsel %vm712, %v704, 0
      %v795 = vsel %vm712, %v705, 0
      %v798 = vsel %vm712, %v706, 0
      %v801 = vsel %vm712, %v707, 0
      %v804 = vsel %vm712, %v708, 0
      %v807 = vsel %vm712, %v709, 0
      %vm809 = vcmask 1043456
      %v811 = vsel %vm809, %v711, 0
      %813 = vmatprep.subr.mxu0 0.0
      %814 = vmatpush1.msra.mxu0 0.0
      %815 = vmatprep.subr.mxu0 0.0
      %816 = vmatpush1.msra.mxu0 0.0
      %817 = vmatprep.subr.mxu0 0.0
      %818 = vmatpush1.msra.mxu0 0.0
      %819 = vmatprep.subr.mxu0 0.0
      %820 = vmatpush1.msra.mxu0 0.0
      %821 = vmatprep.subr.mxu0 0.0
      %822 = vmatpush1.msra.mxu0 0.0
      %823 = vmatprep.subr.mxu0 0.0
      %824 = vmatpush1.msra.mxu0 0.0
      %825 = vmatprep.subr.mxu0 0.0
      %826 = vmatpush1.msra.mxu0 0.0
      %827 = vmatprep.subr.mxu0 0.0
      %828 = vmatpush1.msra.mxu0 0.0
      %829 = vmatprep.subr.mxu0 0.0
      %830 = vmatpush1.msra.mxu0 0.0
      %831 = vmatprep.subr.mxu0 0.0
      %832 = vmatpush1.msra.mxu0 0.0
      %833 = vmatprep.subr.mxu0 0.0
      %834 = vmatpush1.msra.mxu0 0.0
      %835 = vmatprep.subr.mxu0 0.0
      %836 = vmatpush1.msra.mxu0 0.0
      %837 = vmatprep.subr.mxu0 0.0
      %838 = vmatpush1.msra.mxu0 0.0
      %839 = vmatprep.subr.mxu0 0.0
      %840 = vmatpush1.msra.mxu0 0.0
      %841 = vmatprep.subr.mxu0 0.0
      %842 = vmatpush1.msra.mxu0 %v811
      %843 = vmatprep.subr.mxu0 0.0
      %844 = vmatpush1.msra.mxu0 %v710
      %845 = vmatprep.subr.mxu0 0.0
      %846 = vmatpush2.msra.mxu0 0.0
      %847 = vmatprep.subr.mxu0 0.0
      %848 = vmatpush2.msra.mxu0 0.0
      %849 = vmatprep.subr.mxu0 0.0
      %850 = vmatpush2.msra.mxu0 0.0
      %851 = vmatprep.subr.mxu0 0.0
      %852 = vmatpush2.msra.mxu0 0.0
      %853 = vmatprep.subr.mxu0 0.0
      %854 = vmatpush2.msra.mxu0 0.0
      %855 = vmatprep.subr.mxu0 0.0
      %856 = vmatpush2.msra.mxu0 0.0
      %857 = vmatprep.subr.mxu0 0.0
      %858 = vmatpush2.msra.mxu0 0.0
      %859 = vmatprep.subr.mxu0 0.0
      %860 = vmatpush2.msra.mxu0 0.0
      %861 = vmatprep.subr.mxu0 0.0
      %862 = vmatpush2.msra.mxu0 0.0
      %863 = vmatprep.subr.mxu0 0.0
      %864 = vmatpush2.msra.mxu0 0.0
      %865 = vmatprep.subr.mxu0 0.0
      %866 = vmatpush2.msra.mxu0 0.0
      %867 = vmatprep.subr.mxu0 0.0
      %868 = vmatpush2.msra.mxu0 0.0
      %869 = vmatprep.subr.mxu0 0.0
      %870 = vmatpush2.msra.mxu0 0.0
      %871 = vmatprep.subr.mxu0 0.0
      %872 = vmatpush2.msra.mxu0 0.0
      %873 = vmatprep.subr.mxu0 0.0
      %874 = vmatpush2.msra.mxu0 0.0
      %875 = vmatprep.subr.mxu0 0.0
      %876 = vmatpush2.msra.mxu0 0.0
      %877 = vmatprep.mubr.f32.mxu0 0.0
      %878 = vmatmul.mubr.f32.gmra.mxu0 %v714
      %v879 = vpop.f32.mrf.mxu0
      %v880 = vadd.f32 0.0, %v879
      %v881 = vpop.f32.mrf.mxu0
      %882 = vmatprep.mubr.f32.mxu0 0.0
      %883 = vmatmul.mubr.f32.gmra.mxu0 %v717
      %v884 = vpop.f32.mrf.mxu0
      %v885 = vadd.f32 0.0, %v884
      %v886 = vpop.f32.mrf.mxu0
      %887 = vmatprep.mubr.f32.mxu0 0.0
      %888 = vmatmul.mubr.f32.gmra.mxu0 %v720
      %v889 = vpop.f32.mrf.mxu0
      %v890 = vadd.f32 0.0, %v889
      %v891 = vpop.f32.mrf.mxu0
      %892 = vmatprep.mubr.f32.mxu0 0.0
      %893 = vmatmul.mubr.f32.gmra.mxu0 %v723
      %v894 = vpop.f32.mrf.mxu0
      %v895 = vadd.f32 0.0, %v894
      %v896 = vpop.f32.mrf.mxu0
      %897 = vmatprep.mubr.f32.mxu0 0.0
      %898 = vmatmul.mubr.f32.gmra.mxu0 %v726
      %v899 = vpop.f32.mrf.mxu0
      %v900 = vadd.f32 0.0, %v899
      %v901 = vpop.f32.mrf.mxu0
      %902 = vmatprep.mubr.f32.mxu0 0.0
      %903 = vmatmul.mubr.f32.gmra.mxu0 %v729
      %v904 = vpop.f32.mrf.mxu0
      %v905 = vadd.f32 0.0, %v904
      %v906 = vpop.f32.mrf.mxu0
      %907 = vmatprep.mubr.f32.mxu0 0.0
      %908 = vmatmul.mubr.f32.gmra.mxu0 %v732
      %v909 = vpop.f32.mrf.mxu0
      %v910 = vadd.f32 0.0, %v909
      %v911 = vpop.f32.mrf.mxu0
      %912 = vmatprep.mubr.f32.mxu0 0.0
      %913 = vmatmul.mubr.f32.gmra.mxu0 %v735
      %v914 = vpop.f32.mrf.mxu0
      %v915 = vadd.f32 0.0, %v914
      %v916 = vpop.f32.mrf.mxu0
      %917 = vmatprep.mubr.f32.mxu0 0.0
      %918 = vmatmul.mubr.f32.gmra.mxu0 %v738
      %v919 = vpop.f32.mrf.mxu0
      %v920 = vadd.f32 0.0, %v919
      %v921 = vpop.f32.mrf.mxu0
      %922 = vmatprep.mubr.f32.mxu0 0.0
      %923 = vmatmul.mubr.f32.gmra.mxu0 %v741
      %v924 = vpop.f32.mrf.mxu0
      %v925 = vadd.f32 0.0, %v924
      %v926 = vpop.f32.mrf.mxu0
      %927 = vmatprep.mubr.f32.mxu0 0.0
      %928 = vmatmul.mubr.f32.gmra.mxu0 %v744
      %v929 = vpop.f32.mrf.mxu0
      %v930 = vadd.f32 0.0, %v929
      %v931 = vpop.f32.mrf.mxu0
      %932 = vmatprep.mubr.f32.mxu0 0.0
      %933 = vmatmul.mubr.f32.gmra.mxu0 %v747
      %v934 = vpop.f32.mrf.mxu0
      %v935 = vadd.f32 0.0, %v934
      %v936 = vpop.f32.mrf.mxu0
      %937 = vmatprep.mubr.f32.mxu0 0.0
      %938 = vmatmul.mubr.f32.gmra.mxu0 %v750
      %v939 = vpop.f32.mrf.mxu0
      %v940 = vadd.f32 0.0, %v939
      %v941 = vpop.f32.mrf.mxu0
      %942 = vmatprep.mubr.f32.mxu0 0.0
      %943 = vmatmul.mubr.f32.gmra.mxu0 %v753
      %v944 = vpop.f32.mrf.mxu0
      %v945 = vadd.f32 0.0, %v944
      %v946 = vpop.f32.mrf.mxu0
      %947 = vmatprep.mubr.f32.mxu0 0.0
      %948 = vmatmul.mubr.f32.gmra.mxu0 %v756
      %v949 = vpop.f32.mrf.mxu0
      %v950 = vadd.f32 0.0, %v949
      %v951 = vpop.f32.mrf.mxu0
      %952 = vmatprep.mubr.f32.mxu0 0.0
      %953 = vmatmul.mubr.f32.gmra.mxu0 %v759
      %v954 = vpop.f32.mrf.mxu0
      %v955 = vadd.f32 0.0, %v954
      %v956 = vpop.f32.mrf.mxu0
      %957 = vmatprep.mubr.f32.mxu0 0.0
      %958 = vmatmul.mubr.f32.gmra.mxu0 %v762
      %v959 = vpop.f32.mrf.mxu0
      %v960 = vadd.f32 0.0, %v959
      %v961 = vpop.f32.mrf.mxu0
      %962 = vmatprep.mubr.f32.mxu0 0.0
      %963 = vmatmul.mubr.f32.gmra.mxu0 %v765
      %v964 = vpop.f32.mrf.mxu0
      %v965 = vadd.f32 0.0, %v964
      %v966 = vpop.f32.mrf.mxu0
      %967 = vmatprep.mubr.f32.mxu0 0.0
      %968 = vmatmul.mubr.f32.gmra.mxu0 %v768
      %v969 = vpop.f32.mrf.mxu0
      %v970 = vadd.f32 0.0, %v969
      %v971 = vpop.f32.mrf.mxu0
      %972 = vmatprep.mubr.f32.mxu0 0.0
      %973 = vmatmul.mubr.f32.gmra.mxu0 %v771
      %v974 = vpop.f32.mrf.mxu0
      %v975 = vadd.f32 0.0, %v974
      %v976 = vpop.f32.mrf.mxu0
      %977 = vmatprep.mubr.f32.mxu0 0.0
      %978 = vmatmul.mubr.f32.gmra.mxu0 %v774
      %v979 = vpop.f32.mrf.mxu0
      %v980 = vadd.f32 0.0, %v979
      %v981 = vpop.f32.mrf.mxu0
      %982 = vmatprep.mubr.f32.mxu0 0.0
      %983 = vmatmul.mubr.f32.gmra.mxu0 %v777
      %v984 = vpop.f32.mrf.mxu0
      %v985 = vadd.f32 0.0, %v984
      %v986 = vpop.f32.mrf.mxu0
      %987 = vmatprep.mubr.f32.mxu0 0.0
      %988 = vmatmul.mubr.f32.gmra.mxu0 %v780
      %v989 = vpop.f32.mrf.mxu0
      %v990 = vadd.f32 0.0, %v989
      %v991 = vpop.f32.mrf.mxu0
      %992 = vmatprep.mubr.f32.mxu0 0.0
      %993 = vmatmul.mubr.f32.gmra.mxu0 %v783
      %v994 = vpop.f32.mrf.mxu0
      %v995 = vadd.f32 0.0, %v994
      %v996 = vpop.f32.mrf.mxu0
      %997 = vmatprep.mubr.f32.mxu0 0.0
      %998 = vmatmul.mubr.f32.gmra.mxu0 %v786
      %v999 = vpop.f32.mrf.mxu0
      %v1000 = vadd.f32 0.0, %v999
      %v1001 = vpop.f32.mrf.mxu0
      %1002 = vmatprep.mubr.f32.mxu0 0.0
      %1003 = vmatmul.mubr.f32.gmra.mxu0 %v789
      %v1004 = vpop.f32.mrf.mxu0
      %v1005 = vadd.f32 0.0, %v1004
      %v1006 = vpop.f32.mrf.mxu0
      %1007 = vmatprep.mubr.f32.mxu0 0.0
      %1008 = vmatmul.mubr.f32.gmra.mxu0 %v792
      %v1009 = vpop.f32.mrf.mxu0
      %v1010 = vadd.f32 0.0, %v1009
      %v1011 = vpop.f32.mrf.mxu0
      %1012 = vmatprep.mubr.f32.mxu0 0.0
      %1013 = vmatmul.mubr.f32.gmra.mxu0 %v795
      %v1014 = vpop.f32.mrf.mxu0
      %v1015 = vadd.f32 0.0, %v1014
      %v1016 = vpop.f32.mrf.mxu0
      %1017 = vmatprep.mubr.f32.mxu0 0.0
      %1018 = vmatmul.mubr.f32.gmra.mxu0 %v798
      %v1019 = vpop.f32.mrf.mxu0
      %v1020 = vadd.f32 0.0, %v1019
      %v1021 = vpop.f32.mrf.mxu0
      %1022 = vmatprep.mubr.f32.mxu0 0.0
      %1023 = vmatmul.mubr.f32.gmra.mxu0 %v801
      %v1024 = vpop.f32.mrf.mxu0
      %v1025 = vadd.f32 0.0, %v1024
      %v1026 = vpop.f32.mrf.mxu0
      %1027 = vmatprep.mubr.f32.mxu0 0.0
      %1028 = vmatmul.mubr.f32.gmra.mxu0 %v804
      %v1029 = vpop.f32.mrf.mxu0
      %v1030 = vadd.f32 0.0, %v1029
      %v1031 = vpop.f32.mrf.mxu0
      %1032 = vmatprep.mubr.f32.mxu0 0.0
      %1033 = vmatmul.mubr.f32.gmra.mxu0 %v807
      %v1034 = vpop.f32.mrf.mxu0
      %v1035 = vadd.f32 0.0, %v1034
      %v1036 = vpop.f32.mrf.mxu0
      %1037 = vdwg.mxu0
      %1038 = vst.msk [vmem:[#allocation3] sm:$0xff] %vm207, %v880
      %1039 = vst.msk [vmem:[#allocation3 + $0x8] sm:$0xff] %vm207, %v885
      %1040 = vst.msk [vmem:[#allocation3 + $0x10] sm:$0xff] %vm207, %v890
      %1041 = vst.msk [vmem:[#allocation3 + $0x18] sm:$0xff] %vm207, %v895
      %1042 = vst.msk [vmem:[#allocation3 + $0x20] sm:$0xff] %vm207, %v900
      %1043 = vst.msk [vmem:[#allocation3 + $0x28] sm:$0xff] %vm207, %v905
      %1044 = vst.msk [vmem:[#allocation3 + $0x30] sm:$0xff] %vm207, %v910
      %1045 = vst.msk [vmem:[#allocation3 + $0x38] sm:$0xff] %vm207, %v915
      %1046 = vst.msk [vmem:[#allocation3 + $0x40] sm:$0xff] %vm207, %v920
      %1047 = vst.msk [vmem:[#allocation3 + $0x48] sm:$0xff] %vm207, %v925
      %1048 = vst.msk [vmem:[#allocation3 + $0x50] sm:$0xff] %vm207, %v930
      %1049 = vst.msk [vmem:[#allocation3 + $0x58] sm:$0xff] %vm207, %v935
      %1050 = vst.msk [vmem:[#allocation3 + $0x60] sm:$0xff] %vm207, %v940
      %1051 = vst.msk [vmem:[#allocation3 + $0x68] sm:$0xff] %vm207, %v945
      %1052 = vst.msk [vmem:[#allocation3 + $0x70] sm:$0xff] %vm207, %v950
      %1053 = vst.msk [vmem:[#allocation3 + $0x78] sm:$0xff] %vm207, %v955
      %1054 = vst.msk [vmem:[#allocation3 + $0x80] sm:$0xff] %vm207, %v960
      %1055 = vst.msk [vmem:[#allocation3 + $0x88] sm:$0xff] %vm207, %v965
      %1056 = vst.msk [vmem:[#allocation3 + $0x90] sm:$0xff] %vm207, %v970
      %1057 = vst.msk [vmem:[#allocation3 + $0x98] sm:$0xff] %vm207, %v975
      %1058 = vst.msk [vmem:[#allocation3 + $0xa0] sm:$0xff] %vm207, %v980
      %1059 = vst.msk [vmem:[#allocation3 + $0xa8] sm:$0xff] %vm207, %v985
      %1060 = vst.msk [vmem:[#allocation3 + $0xb0] sm:$0xff] %vm207, %v990
      %1061 = vst.msk [vmem:[#allocation3 + $0xb8] sm:$0xff] %vm207, %v995
      %1062 = vst.msk [vmem:[#allocation3 + $0xc0] sm:$0xff] %vm207, %v1000
      %1063 = vst.msk [vmem:[#allocation3 + $0xc8] sm:$0xff] %vm207, %v1005
      %1064 = vst.msk [vmem:[#allocation3 + $0xd0] sm:$0xff] %vm207, %v1010
      %1065 = vst.msk [vmem:[#allocation3 + $0xd8] sm:$0xff] %vm207, %v1015
      %1066 = vst.msk [vmem:[#allocation3 + $0xe0] sm:$0xff] %vm207, %v1020
      %1067 = vst.msk [vmem:[#allocation3 + $0xe8] sm:$0xff] %vm207, %v1025
      %1068 = vst.msk [vmem:[#allocation3 + $0xf0] sm:$0xff] %vm207, %v1030
      %1069 = vst.msk [vmem:[#allocation3 + $0xf8] sm:$0xff] %vm207, %v1035
      %v1070 = vld [vmem:[#allocation3] sm:$0xff]
      %v1071 = vld [vmem:[#allocation3 + $0x8] sm:$0xff]
      %v1072 = vld [vmem:[#allocation3 + $0x10] sm:$0xff]
      %v1073 = vld [vmem:[#allocation3 + $0x18] sm:$0xff]
      %v1074 = vld [vmem:[#allocation3 + $0x20] sm:$0xff]
      %v1075 = vld [vmem:[#allocation3 + $0x28] sm:$0xff]
      %v1076 = vld [vmem:[#allocation3 + $0x30] sm:$0xff]
      %v1077 = vld [vmem:[#allocation3 + $0x38] sm:$0xff]
      %v1078 = vld [vmem:[#allocation3 + $0x40] sm:$0xff]
      %v1079 = vld [vmem:[#allocation3 + $0x48] sm:$0xff]
      %v1080 = vld [vmem:[#allocation3 + $0x50] sm:$0xff]
      %v1081 = vld [vmem:[#allocation3 + $0x58] sm:$0xff]
      %v1082 = vld [vmem:[#allocation3 + $0x60] sm:$0xff]
      %v1083 = vld [vmem:[#allocation3 + $0x68] sm:$0xff]
      %v1084 = vld [vmem:[#allocation3 + $0x70] sm:$0xff]
      %v1085 = vld [vmem:[#allocation3 + $0x78] sm:$0xff]
      %v1086 = vld [vmem:[#allocation3 + $0x80] sm:$0xff]
      %v1087 = vld [vmem:[#allocation3 + $0x88] sm:$0xff]
      %v1088 = vld [vmem:[#allocation3 + $0x90] sm:$0xff]
      %v1089 = vld [vmem:[#allocation3 + $0x98] sm:$0xff]
      %v1090 = vld [vmem:[#allocation3 + $0xa0] sm:$0xff]
      %v1091 = vld [vmem:[#allocation3 + $0xa8] sm:$0xff]
      %v1092 = vld [vmem:[#allocation3 + $0xb0] sm:$0xff]
      %v1093 = vld [vmem:[#allocation3 + $0xb8] sm:$0xff]
      %v1094 = vld [vmem:[#allocation3 + $0xc0] sm:$0xff]
      %v1095 = vld [vmem:[#allocation3 + $0xc8] sm:$0xff]
      %v1096 = vld [vmem:[#allocation3 + $0xd0] sm:$0xff]
      %v1097 = vld [vmem:[#allocation3 + $0xd8] sm:$0xff]
      %v1098 = vld [vmem:[#allocation3 + $0xe0] sm:$0xff]
      %v1099 = vld [vmem:[#allocation3 + $0xe8] sm:$0xff]
      %v1100 = vld [vmem:[#allocation3 + $0xf0] sm:$0xff]
      %v1101 = vld [vmem:[#allocation3 + $0xf8] sm:$0xff]
      %v1102 = vld [vmem:[#allocation2 + $0x10] sm:$0xff]
      %v1103 = vld [vmem:[#allocation2 + $0x18] sm:$0xff]
      %v1104 = vld [vmem:[#allocation2 + $0x20] sm:$0xff]
      %v1105 = vld [vmem:[#allocation2 + $0x28] sm:$0xff]
      %v1106 = vld [vmem:[#allocation2 + $0x30] sm:$0xff]
      %v1107 = vld [vmem:[#allocation2 + $0x38] sm:$0xff]
      %v1108 = vld [vmem:[#allocation2 + $0x40] sm:$0xff]
      %v1109 = vld [vmem:[#allocation2 + $0x48] sm:$0xff]
      %v1110 = vld [vmem:[#allocation2 + $0x50] sm:$0xff]
      %v1111 = vld [vmem:[#allocation2 + $0x58] sm:$0xff]
      %v1112 = vld [vmem:[#allocation2 + $0x60] sm:$0xff]
      %v1113 = vld [vmem:[#allocation2 + $0x68] sm:$0xff]
      %v1114 = vld [vmem:[#allocation2 + $0x70] sm:$0xff]
      %v1115 = vld [vmem:[#allocation2 + $0x78] sm:$0xff]
      %v1116 = vld [vmem:[#allocation2 + $0x80] sm:$0xff]
      %v1117 = vld [vmem:[#allocation2 + $0x88] sm:$0xff]
      %v1118 = vld [vmem:[#allocation2 + $0x90] sm:$0xff]
      %v1119 = vld [vmem:[#allocation2 + $0x98] sm:$0xff]
      %v1120 = vld [vmem:[#allocation2 + $0xa0] sm:$0xff]
      %v1121 = vld [vmem:[#allocation2 + $0xa8] sm:$0xff]
      %v1122 = vld [vmem:[#allocation2 + $0xb0] sm:$0xff]
      %v1123 = vld [vmem:[#allocation2 + $0xb8] sm:$0xff]
      %v1124 = vld [vmem:[#allocation2 + $0xc0] sm:$0xff]
      %v1125 = vld [vmem:[#allocation2 + $0xc8] sm:$0xff]
      %v1126 = vld [vmem:[#allocation2 + $0xd0] sm:$0xff]
      %v1127 = vld [vmem:[#allocation2 + $0xd8] sm:$0xff]
      %v1128 = vld [vmem:[#allocation2 + $0xe0] sm:$0xff]
      %v1129 = vld [vmem:[#allocation2 + $0xe8] sm:$0xff]
      %v1130 = vld [vmem:[#allocation2 + $0xf0] sm:$0xff]
      %v1131 = vld [vmem:[#allocation2 + $0xf8] sm:$0xff]
      %v1132 = vld [vmem:[#allocation2 + $0x100] sm:$0xff]
      %v1133 = vld [vmem:[#allocation2 + $0x108] sm:$0xff]
      %s1134 = scalar_lea.vmem %s1, 16
      %v1135 = vld [vmem:[%s1134] sm:$0xff]
      %v1136 = vld [vmem:[%s1134 + $0x8] sm:$0xf]
      %v1138 = vsel %vm712, %v1102, 0
      %v1141 = vsel %vm712, %v1103, 0
      %v1144 = vsel %vm712, %v1104, 0
      %v1147 = vsel %vm712, %v1105, 0
      %v1150 = vsel %vm712, %v1106, 0
      %v1153 = vsel %vm712, %v1107, 0
      %v1156 = vsel %vm712, %v1108, 0
      %v1159 = vsel %vm712, %v1109, 0
      %v1162 = vsel %vm712, %v1110, 0
      %v1165 = vsel %vm712, %v1111, 0
      %v1168 = vsel %vm712, %v1112, 0
      %v1171 = vsel %vm712, %v1113, 0
      %v1174 = vsel %vm712, %v1114, 0
      %v1177 = vsel %vm712, %v1115, 0
      %v1180 = vsel %vm712, %v1116, 0
      %v1183 = vsel %vm712, %v1117, 0
      %v1186 = vsel %vm712, %v1118, 0
      %v1189 = vsel %vm712, %v1119, 0
      %v1192 = vsel %vm712, %v1120, 0
      %v1195 = vsel %vm712, %v1121, 0
      %v1198 = vsel %vm712, %v1122, 0
      %v1201 = vsel %vm712, %v1123, 0
      %v1204 = vsel %vm712, %v1124, 0
      %v1207 = vsel %vm712, %v1125, 0
      %v1210 = vsel %vm712, %v1126, 0
      %v1213 = vsel %vm712, %v1127, 0
      %v1216 = vsel %vm712, %v1128, 0
      %v1219 = vsel %vm712, %v1129, 0
      %v1222 = vsel %vm712, %v1130, 0
      %v1225 = vsel %vm712, %v1131, 0
      %v1228 = vsel %vm712, %v1132, 0
      %v1231 = vsel %vm712, %v1133, 0
      %v1234 = vsel %vm809, %v1136, 0
      %1236 = vmatprep.subr.mxu0 0.0
      %1237 = vmatpush1.msra.mxu0 0.0
      %1238 = vmatprep.subr.mxu0 0.0
      %1239 = vmatpush1.msra.mxu0 0.0
      %1240 = vmatprep.subr.mxu0 0.0
      %1241 = vmatpush1.msra.mxu0 0.0
      %1242 = vmatprep.subr.mxu0 0.0
      %1243 = vmatpush1.msra.mxu0 0.0
      %1244 = vmatprep.subr.mxu0 0.0
      %1245 = vmatpush1.msra.mxu0 0.0
      %1246 = vmatprep.subr.mxu0 0.0
      %1247 = vmatpush1.msra.mxu0 0.0
      %1248 = vmatprep.subr.mxu0 0.0
      %1249 = vmatpush1.msra.mxu0 0.0
      %1250 = vmatprep.subr.mxu0 0.0
      %1251 = vmatpush1.msra.mxu0 0.0
      %1252 = vmatprep.subr.mxu0 0.0
      %1253 = vmatpush1.msra.mxu0 0.0
      %1254 = vmatprep.subr.mxu0 0.0
      %1255 = vmatpush1.msra.mxu0 0.0
      %1256 = vmatprep.subr.mxu0 0.0
      %1257 = vmatpush1.msra.mxu0 0.0
      %1258 = vmatprep.subr.mxu0 0.0
      %1259 = vmatpush1.msra.mxu0 0.0
      %1260 = vmatprep.subr.mxu0 0.0
      %1261 = vmatpush1.msra.mxu0 0.0
      %1262 = vmatprep.subr.mxu0 0.0
      %1263 = vmatpush1.msra.mxu0 0.0
      %1264 = vmatprep.subr.mxu0 0.0
      %1265 = vmatpush1.msra.mxu0 %v1234
      %1266 = vmatprep.subr.mxu0 0.0
      %1267 = vmatpush1.msra.mxu0 %v1135
      %1268 = vmatprep.subr.mxu0 0.0
      %1269 = vmatpush2.msra.mxu0 0.0
      %1270 = vmatprep.subr.mxu0 0.0
      %1271 = vmatpush2.msra.mxu0 0.0
      %1272 = vmatprep.subr.mxu0 0.0
      %1273 = vmatpush2.msra.mxu0 0.0
      %1274 = vmatprep.subr.mxu0 0.0
      %1275 = vmatpush2.msra.mxu0 0.0
      %1276 = vmatprep.subr.mxu0 0.0
      %1277 = vmatpush2.msra.mxu0 0.0
      %1278 = vmatprep.subr.mxu0 0.0
      %1279 = vmatpush2.msra.mxu0 0.0
      %1280 = vmatprep.subr.mxu0 0.0
      %1281 = vmatpush2.msra.mxu0 0.0
      %1282 = vmatprep.subr.mxu0 0.0
      %1283 = vmatpush2.msra.mxu0 0.0
      %1284 = vmatprep.subr.mxu0 0.0
      %1285 = vmatpush2.msra.mxu0 0.0
      %1286 = vmatprep.subr.mxu0 0.0
      %1287 = vmatpush2.msra.mxu0 0.0
      %1288 = vmatprep.subr.mxu0 0.0
      %1289 = vmatpush2.msra.mxu0 0.0
      %1290 = vmatprep.subr.mxu0 0.0
      %1291 = vmatpush2.msra.mxu0 0.0
      %1292 = vmatprep.subr.mxu0 0.0
      %1293 = vmatpush2.msra.mxu0 0.0
      %1294 = vmatprep.subr.mxu0 0.0
      %1295 = vmatpush2.msra.mxu0 0.0
      %1296 = vmatprep.subr.mxu0 0.0
      %1297 = vmatpush2.msra.mxu0 0.0
      %1298 = vmatprep.subr.mxu0 0.0
      %1299 = vmatpush2.msra.mxu0 0.0
      %1300 = vmatprep.mubr.f32.mxu0 0.0
      %1301 = vmatmul.mubr.f32.gmra.mxu0 %v1138
      %v1302 = vpop.f32.mrf.mxu0
      %v1303 = vadd.f32 0.0, %v1302
      %v1304 = vpop.f32.mrf.mxu0
      %1305 = vmatprep.mubr.f32.mxu0 0.0
      %1306 = vmatmul.mubr.f32.gmra.mxu0 %v1141
      %v1307 = vpop.f32.mrf.mxu0
      %v1308 = vadd.f32 0.0, %v1307
      %v1309 = vpop.f32.mrf.mxu0
      %1310 = vmatprep.mubr.f32.mxu0 0.0
      %1311 = vmatmul.mubr.f32.gmra.mxu0 %v1144
      %v1312 = vpop.f32.mrf.mxu0
      %v1313 = vadd.f32 0.0, %v1312
      %v1314 = vpop.f32.mrf.mxu0
      %1315 = vmatprep.mubr.f32.mxu0 0.0
      %1316 = vmatmul.mubr.f32.gmra.mxu0 %v1147
      %v1317 = vpop.f32.mrf.mxu0
      %v1318 = vadd.f32 0.0, %v1317
      %v1319 = vpop.f32.mrf.mxu0
      %1320 = vmatprep.mubr.f32.mxu0 0.0
      %1321 = vmatmul.mubr.f32.gmra.mxu0 %v1150
      %v1322 = vpop.f32.mrf.mxu0
      %v1323 = vadd.f32 0.0, %v1322
      %v1324 = vpop.f32.mrf.mxu0
      %1325 = vmatprep.mubr.f32.mxu0 0.0
      %1326 = vmatmul.mubr.f32.gmra.mxu0 %v1153
      %v1327 = vpop.f32.mrf.mxu0
      %v1328 = vadd.f32 0.0, %v1327
      %v1329 = vpop.f32.mrf.mxu0
      %1330 = vmatprep.mubr.f32.mxu0 0.0
      %1331 = vmatmul.mubr.f32.gmra.mxu0 %v1156
      %v1332 = vpop.f32.mrf.mxu0
      %v1333 = vadd.f32 0.0, %v1332
      %v1334 = vpop.f32.mrf.mxu0
      %1335 = vmatprep.mubr.f32.mxu0 0.0
      %1336 = vmatmul.mubr.f32.gmra.mxu0 %v1159
      %v1337 = vpop.f32.mrf.mxu0
      %v1338 = vadd.f32 0.0, %v1337
      %v1339 = vpop.f32.mrf.mxu0
      %1340 = vmatprep.mubr.f32.mxu0 0.0
      %1341 = vmatmul.mubr.f32.gmra.mxu0 %v1162
      %v1342 = vpop.f32.mrf.mxu0
      %v1343 = vadd.f32 0.0, %v1342
      %v1344 = vpop.f32.mrf.mxu0
      %1345 = vmatprep.mubr.f32.mxu0 0.0
      %1346 = vmatmul.mubr.f32.gmra.mxu0 %v1165
      %v1347 = vpop.f32.mrf.mxu0
      %v1348 = vadd.f32 0.0, %v1347
      %v1349 = vpop.f32.mrf.mxu0
      %1350 = vmatprep.mubr.f32.mxu0 0.0
      %1351 = vmatmul.mubr.f32.gmra.mxu0 %v1168
      %v1352 = vpop.f32.mrf.mxu0
      %v1353 = vadd.f32 0.0, %v1352
      %v1354 = vpop.f32.mrf.mxu0
      %1355 = vmatprep.mubr.f32.mxu0 0.0
      %1356 = vmatmul.mubr.f32.gmra.mxu0 %v1171
      %v1357 = vpop.f32.mrf.mxu0
      %v1358 = vadd.f32 0.0, %v1357
      %v1359 = vpop.f32.mrf.mxu0
      %1360 = vmatprep.mubr.f32.mxu0 0.0
      %1361 = vmatmul.mubr.f32.gmra.mxu0 %v1174
      %v1362 = vpop.f32.mrf.mxu0
      %v1363 = vadd.f32 0.0, %v1362
      %v1364 = vpop.f32.mrf.mxu0
      %1365 = vmatprep.mubr.f32.mxu0 0.0
      %1366 = vmatmul.mubr.f32.gmra.mxu0 %v1177
      %v1367 = vpop.f32.mrf.mxu0
      %v1368 = vadd.f32 0.0, %v1367
      %v1369 = vpop.f32.mrf.mxu0
      %1370 = vmatprep.mubr.f32.mxu0 0.0
      %1371 = vmatmul.mubr.f32.gmra.mxu0 %v1180
      %v1372 = vpop.f32.mrf.mxu0
      %v1373 = vadd.f32 0.0, %v1372
      %v1374 = vpop.f32.mrf.mxu0
      %1375 = vmatprep.mubr.f32.mxu0 0.0
      %1376 = vmatmul.mubr.f32.gmra.mxu0 %v1183
      %v1377 = vpop.f32.mrf.mxu0
      %v1378 = vadd.f32 0.0, %v1377
      %v1379 = vpop.f32.mrf.mxu0
      %1380 = vmatprep.mubr.f32.mxu0 0.0
      %1381 = vmatmul.mubr.f32.gmra.mxu0 %v1186
      %v1382 = vpop.f32.mrf.mxu0
      %v1383 = vadd.f32 0.0, %v1382
      %v1384 = vpop.f32.mrf.mxu0
      %1385 = vmatprep.mubr.f32.mxu0 0.0
      %1386 = vmatmul.mubr.f32.gmra.mxu0 %v1189
      %v1387 = vpop.f32.mrf.mxu0
      %v1388 = vadd.f32 0.0, %v1387
      %v1389 = vpop.f32.mrf.mxu0
      %1390 = vmatprep.mubr.f32.mxu0 0.0
      %1391 = vmatmul.mubr.f32.gmra.mxu0 %v1192
      %v1392 = vpop.f32.mrf.mxu0
      %v1393 = vadd.f32 0.0, %v1392
      %v1394 = vpop.f32.mrf.mxu0
      %1395 = vmatprep.mubr.f32.mxu0 0.0
      %1396 = vmatmul.mubr.f32.gmra.mxu0 %v1195
      %v1397 = vpop.f32.mrf.mxu0
      %v1398 = vadd.f32 0.0, %v1397
      %v1399 = vpop.f32.mrf.mxu0
      %1400 = vmatprep.mubr.f32.mxu0 0.0
      %1401 = vmatmul.mubr.f32.gmra.mxu0 %v1198
      %v1402 = vpop.f32.mrf.mxu0
      %v1403 = vadd.f32 0.0, %v1402
      %v1404 = vpop.f32.mrf.mxu0
      %1405 = vmatprep.mubr.f32.mxu0 0.0
      %1406 = vmatmul.mubr.f32.gmra.mxu0 %v1201
      %v1407 = vpop.f32.mrf.mxu0
      %v1408 = vadd.f32 0.0, %v1407
      %v1409 = vpop.f32.mrf.mxu0
      %1410 = vmatprep.mubr.f32.mxu0 0.0
      %1411 = vmatmul.mubr.f32.gmra.mxu0 %v1204
      %v1412 = vpop.f32.mrf.mxu0
      %v1413 = vadd.f32 0.0, %v1412
      %v1414 = vpop.f32.mrf.mxu0
      %1415 = vmatprep.mubr.f32.mxu0 0.0
      %1416 = vmatmul.mubr.f32.gmra.mxu0 %v1207
      %v1417 = vpop.f32.mrf.mxu0
      %v1418 = vadd.f32 0.0, %v1417
      %v1419 = vpop.f32.mrf.mxu0
      %1420 = vmatprep.mubr.f32.mxu0 0.0
      %1421 = vmatmul.mubr.f32.gmra.mxu0 %v1210
      %v1422 = vpop.f32.mrf.mxu0
      %v1423 = vadd.f32 0.0, %v1422
      %v1424 = vpop.f32.mrf.mxu0
      %1425 = vmatprep.mubr.f32.mxu0 0.0
      %1426 = vmatmul.mubr.f32.gmra.mxu0 %v1213
      %v1427 = vpop.f32.mrf.mxu0
      %v1428 = vadd.f32 0.0, %v1427
      %v1429 = vpop.f32.mrf.mxu0
      %1430 = vmatprep.mubr.f32.mxu0 0.0
      %1431 = vmatmul.mubr.f32.gmra.mxu0 %v1216
      %v1432 = vpop.f32.mrf.mxu0
      %v1433 = vadd.f32 0.0, %v1432
      %v1434 = vpop.f32.mrf.mxu0
      %1435 = vmatprep.mubr.f32.mxu0 0.0
      %1436 = vmatmul.mubr.f32.gmra.mxu0 %v1219
      %v1437 = vpop.f32.mrf.mxu0
      %v1438 = vadd.f32 0.0, %v1437
      %v1439 = vpop.f32.mrf.mxu0
      %1440 = vmatprep.mubr.f32.mxu0 0.0
      %1441 = vmatmul.mubr.f32.gmra.mxu0 %v1222
      %v1442 = vpop.f32.mrf.mxu0
      %v1443 = vadd.f32 0.0, %v1442
      %v1444 = vpop.f32.mrf.mxu0
      %1445 = vmatprep.mubr.f32.mxu0 0.0
      %1446 = vmatmul.mubr.f32.gmra.mxu0 %v1225
      %v1447 = vpop.f32.mrf.mxu0
      %v1448 = vadd.f32 0.0, %v1447
      %v1449 = vpop.f32.mrf.mxu0
      %1450 = vmatprep.mubr.f32.mxu0 0.0
      %1451 = vmatmul.mubr.f32.gmra.mxu0 %v1228
      %v1452 = vpop.f32.mrf.mxu0
      %v1453 = vadd.f32 0.0, %v1452
      %v1454 = vpop.f32.mrf.mxu0
      %1455 = vmatprep.mubr.f32.mxu0 0.0
      %1456 = vmatmul.mubr.f32.gmra.mxu0 %v1231
      %v1457 = vpop.f32.mrf.mxu0
      %v1458 = vadd.f32 0.0, %v1457
      %v1459 = vpop.f32.mrf.mxu0
      %1460 = vdwg.mxu0
      %v1461 = vadd.f32 %v1070, %v1303
      %v1462 = vadd.f32 %v1071, %v1308
      %v1463 = vadd.f32 %v1072, %v1313
      %v1464 = vadd.f32 %v1073, %v1318
      %v1465 = vadd.f32 %v1074, %v1323
      %v1466 = vadd.f32 %v1075, %v1328
      %v1467 = vadd.f32 %v1076, %v1333
      %v1468 = vadd.f32 %v1077, %v1338
      %v1469 = vadd.f32 %v1078, %v1343
      %v1470 = vadd.f32 %v1079, %v1348
      %v1471 = vadd.f32 %v1080, %v1353
      %v1472 = vadd.f32 %v1081, %v1358
      %v1473 = vadd.f32 %v1082, %v1363
      %v1474 = vadd.f32 %v1083, %v1368
      %v1475 = vadd.f32 %v1084, %v1373
      %v1476 = vadd.f32 %v1085, %v1378
      %v1477 = vadd.f32 %v1086, %v1383
      %v1478 = vadd.f32 %v1087, %v1388
      %v1479 = vadd.f32 %v1088, %v1393
      %v1480 = vadd.f32 %v1089, %v1398
      %v1481 = vadd.f32 %v1090, %v1403
      %v1482 = vadd.f32 %v1091, %v1408
      %v1483 = vadd.f32 %v1092, %v1413
      %v1484 = vadd.f32 %v1093, %v1418
      %v1485 = vadd.f32 %v1094, %v1423
      %v1486 = vadd.f32 %v1095, %v1428
      %v1487 = vadd.f32 %v1096, %v1433
      %v1488 = vadd.f32 %v1097, %v1438
      %v1489 = vadd.f32 %v1098, %v1443
      %v1490 = vadd.f32 %v1099, %v1448
      %v1491 = vadd.f32 %v1100, %v1453
      %v1492 = vadd.f32 %v1101, %v1458
      %1493 = vst.msk [vmem:[#allocation3] sm:$0xff] %vm207, %v1461
      %1494 = vst.msk [vmem:[#allocation3 + $0x8] sm:$0xff] %vm207, %v1462
      %1495 = vst.msk [vmem:[#allocation3 + $0x10] sm:$0xff] %vm207, %v1463
      %1496 = vst.msk [vmem:[#allocation3 + $0x18] sm:$0xff] %vm207, %v1464
      %1497 = vst.msk [vmem:[#allocation3 + $0x20] sm:$0xff] %vm207, %v1465
      %1498 = vst.msk [vmem:[#allocation3 + $0x28] sm:$0xff] %vm207, %v1466
      %1499 = vst.msk [vmem:[#allocation3 + $0x30] sm:$0xff] %vm207, %v1467
      %1500 = vst.msk [vmem:[#allocation3 + $0x38] sm:$0xff] %vm207, %v1468
      %1501 = vst.msk [vmem:[#allocation3 + $0x40] sm:$0xff] %vm207, %v1469
      %1502 = vst.msk [vmem:[#allocation3 + $0x48] sm:$0xff] %vm207, %v1470
      %1503 = vst.msk [vmem:[#allocation3 + $0x50] sm:$0xff] %vm207, %v1471
      %1504 = vst.msk [vmem:[#allocation3 + $0x58] sm:$0xff] %vm207, %v1472
      %1505 = vst.msk [vmem:[#allocation3 + $0x60] sm:$0xff] %vm207, %v1473
      %1506 = vst.msk [vmem:[#allocation3 + $0x68] sm:$0xff] %vm207, %v1474
      %1507 = vst.msk [vmem:[#allocation3 + $0x70] sm:$0xff] %vm207, %v1475
      %1508 = vst.msk [vmem:[#allocation3 + $0x78] sm:$0xff] %vm207, %v1476
      %1509 = vst.msk [vmem:[#allocation3 + $0x80] sm:$0xff] %vm207, %v1477
      %1510 = vst.msk [vmem:[#allocation3 + $0x88] sm:$0xff] %vm207, %v1478
      %1511 = vst.msk [vmem:[#allocation3 + $0x90] sm:$0xff] %vm207, %v1479
      %1512 = vst.msk [vmem:[#allocation3 + $0x98] sm:$0xff] %vm207, %v1480
      %1513 = vst.msk [vmem:[#allocation3 + $0xa0] sm:$0xff] %vm207, %v1481
      %1514 = vst.msk [vmem:[#allocation3 + $0xa8] sm:$0xff] %vm207, %v1482
      %1515 = vst.msk [vmem:[#allocation3 + $0xb0] sm:$0xff] %vm207, %v1483
      %1516 = vst.msk [vmem:[#allocation3 + $0xb8] sm:$0xff] %vm207, %v1484
      %1517 = vst.msk [vmem:[#allocation3 + $0xc0] sm:$0xff] %vm207, %v1485
      %1518 = vst.msk [vmem:[#allocation3 + $0xc8] sm:$0xff] %vm207, %v1486
      %1519 = vst.msk [vmem:[#allocation3 + $0xd0] sm:$0xff] %vm207, %v1487
      %1520 = vst.msk [vmem:[#allocation3 + $0xd8] sm:$0xff] %vm207, %v1488
      %1521 = vst.msk [vmem:[#allocation3 + $0xe0] sm:$0xff] %vm207, %v1489
      %1522 = vst.msk [vmem:[#allocation3 + $0xe8] sm:$0xff] %vm207, %v1490
      %1523 = vst.msk [vmem:[#allocation3 + $0xf0] sm:$0xff] %vm207, %v1491
      %1524 = vst.msk [vmem:[#allocation3 + $0xf8] sm:$0xff] %vm207, %v1492
      %v1525 = vld [vmem:[#allocation3] sm:$0xff]
      %v1526 = vld [vmem:[#allocation3 + $0x8] sm:$0xff]
      %v1527 = vld [vmem:[#allocation3 + $0x10] sm:$0xff]
      %v1528 = vld [vmem:[#allocation3 + $0x18] sm:$0xff]
      %v1529 = vld [vmem:[#allocation3 + $0x20] sm:$0xff]
      %v1530 = vld [vmem:[#allocation3 + $0x28] sm:$0xff]
      %v1531 = vld [vmem:[#allocation3 + $0x30] sm:$0xff]
      %v1532 = vld [vmem:[#allocation3 + $0x38] sm:$0xff]
      %v1533 = vld [vmem:[#allocation3 + $0x40] sm:$0xff]
      %v1534 = vld [vmem:[#allocation3 + $0x48] sm:$0xff]
      %v1535 = vld [vmem:[#allocation3 + $0x50] sm:$0xff]
      %v1536 = vld [vmem:[#allocation3 + $0x58] sm:$0xff]
      %v1537 = vld [vmem:[#allocation3 + $0x60] sm:$0xff]
      %v1538 = vld [vmem:[#allocation3 + $0x68] sm:$0xff]
      %v1539 = vld [vmem:[#allocation3 + $0x70] sm:$0xff]
      %v1540 = vld [vmem:[#allocation3 + $0x78] sm:$0xff]
      %v1541 = vld [vmem:[#allocation3 + $0x80] sm:$0xff]
      %v1542 = vld [vmem:[#allocation3 + $0x88] sm:$0xff]
      %v1543 = vld [vmem:[#allocation3 + $0x90] sm:$0xff]
      %v1544 = vld [vmem:[#allocation3 + $0x98] sm:$0xff]
      %v1545 = vld [vmem:[#allocation3 + $0xa0] sm:$0xff]
      %v1546 = vld [vmem:[#allocation3 + $0xa8] sm:$0xff]
      %v1547 = vld [vmem:[#allocation3 + $0xb0] sm:$0xff]
      %v1548 = vld [vmem:[#allocation3 + $0xb8] sm:$0xff]
      %v1549 = vld [vmem:[#allocation3 + $0xc0] sm:$0xff]
      %v1550 = vld [vmem:[#allocation3 + $0xc8] sm:$0xff]
      %v1551 = vld [vmem:[#allocation3 + $0xd0] sm:$0xff]
      %v1552 = vld [vmem:[#allocation3 + $0xd8] sm:$0xff]
      %v1553 = vld [vmem:[#allocation3 + $0xe0] sm:$0xff]
      %v1554 = vld [vmem:[#allocation3 + $0xe8] sm:$0xff]
      %v1555 = vld [vmem:[#allocation3 + $0xf0] sm:$0xff]
      %v1556 = vld [vmem:[#allocation3 + $0xf8] sm:$0xff]
      %v1557 = vld [vmem:[#allocation2 + $0x20] sm:$0xff]
      %v1558 = vld [vmem:[#allocation2 + $0x28] sm:$0xff]
      %v1559 = vld [vmem:[#allocation2 + $0x30] sm:$0xff]
      %v1560 = vld [vmem:[#allocation2 + $0x38] sm:$0xff]
      %v1561 = vld [vmem:[#allocation2 + $0x40] sm:$0xff]
      %v1562 = vld [vmem:[#allocation2 + $0x48] sm:$0xff]
      %v1563 = vld [vmem:[#allocation2 + $0x50] sm:$0xff]
      %v1564 = vld [vmem:[#allocation2 + $0x58] sm:$0xff]
      %v1565 = vld [vmem:[#allocation2 + $0x60] sm:$0xff]
      %v1566 = vld [vmem:[#allocation2 + $0x68] sm:$0xff]
      %v1567 = vld [vmem:[#allocation2 + $0x70] sm:$0xff]
      %v1568 = vld [vmem:[#allocation2 + $0x78] sm:$0xff]
      %v1569 = vld [vmem:[#allocation2 + $0x80] sm:$0xff]
      %v1570 = vld [vmem:[#allocation2 + $0x88] sm:$0xff]
      %v1571 = vld [vmem:[#allocation2 + $0x90] sm:$0xff]
      %v1572 = vld [vmem:[#allocation2 + $0x98] sm:$0xff]
      %v1573 = vld [vmem:[#allocation2 + $0xa0] sm:$0xff]
      %v1574 = vld [vmem:[#allocation2 + $0xa8] sm:$0xff]
      %v1575 = vld [vmem:[#allocation2 + $0xb0] sm:$0xff]
      %v1576 = vld [vmem:[#allocation2 + $0xb8] sm:$0xff]
      %v1577 = vld [vmem:[#allocation2 + $0xc0] sm:$0xff]
      %v1578 = vld [vmem:[#allocation2 + $0xc8] sm:$0xff]
      %v1579 = vld [vmem:[#allocation2 + $0xd0] sm:$0xff]
      %v1580 = vld [vmem:[#allocation2 + $0xd8] sm:$0xff]
      %v1581 = vld [vmem:[#allocation2 + $0xe0] sm:$0xff]
      %v1582 = vld [vmem:[#allocation2 + $0xe8] sm:$0xff]
      %v1583 = vld [vmem:[#allocation2 + $0xf0] sm:$0xff]
      %v1584 = vld [vmem:[#allocation2 + $0xf8] sm:$0xff]
      %v1585 = vld [vmem:[#allocation2 + $0x100] sm:$0xff]
      %v1586 = vld [vmem:[#allocation2 + $0x108] sm:$0xff]
      %v1587 = vld [vmem:[#allocation2 + $0x110] sm:$0xff]
      %v1588 = vld [vmem:[#allocation2 + $0x118] sm:$0xff]
      %s1589 = scalar_lea.vmem %s1, 32
      %v1590 = vld [vmem:[%s1589] sm:$0xff]
      %v1591 = vld [vmem:[%s1589 + $0x8] sm:$0xf]
      %v1593 = vsel %vm712, %v1557, 0
      %v1596 = vsel %vm712, %v1558, 0
      %v1599 = vsel %vm712, %v1559, 0
      %v1602 = vsel %vm712, %v1560, 0
      %v1605 = vsel %vm712, %v1561, 0
      %v1608 = vsel %vm712, %v1562, 0
      %v1611 = vsel %vm712, %v1563, 0
      %v1614 = vsel %vm712, %v1564, 0
      %v1617 = vsel %vm712, %v1565, 0
      %v1620 = vsel %vm712, %v1566, 0
      %v1623 = vsel %vm712, %v1567, 0
      %v1626 = vsel %vm712, %v1568, 0
      %v1629 = vsel %vm712, %v1569, 0
      %v1632 = vsel %vm712, %v1570, 0
      %v1635 = vsel %vm712, %v1571, 0
      %v1638 = vsel %vm712, %v1572, 0
      %v1641 = vsel %vm712, %v1573, 0
      %v1644 = vsel %vm712, %v1574, 0
      %v1647 = vsel %vm712, %v1575, 0
      %v1650 = vsel %vm712, %v1576, 0
      %v1653 = vsel %vm712, %v1577, 0
      %v1656 = vsel %vm712, %v1578, 0
      %v1659 = vsel %vm712, %v1579, 0
      %v1662 = vsel %vm712, %v1580, 0
      %v1665 = vsel %vm712, %v1581, 0
      %v1668 = vsel %vm712, %v1582, 0
      %v1671 = vsel %vm712, %v1583, 0
      %v1674 = vsel %vm712, %v1584, 0
      %v1677 = vsel %vm712, %v1585, 0
      %v1680 = vsel %vm712, %v1586, 0
      %v1683 = vsel %vm712, %v1587, 0
      %v1686 = vsel %vm712, %v1588, 0
      %v1689 = vsel %vm809, %v1591, 0
      %1691 = vmatprep.subr.mxu0 0.0
      %1692 = vmatpush1.msra.mxu0 0.0
      %1693 = vmatprep.subr.mxu0 0.0
      %1694 = vmatpush1.msra.mxu0 0.0
      %1695 = vmatprep.subr.mxu0 0.0
      %1696 = vmatpush1.msra.mxu0 0.0
      %1697 = vmatprep.subr.mxu0 0.0
      %1698 = vmatpush1.msra.mxu0 0.0
      %1699 = vmatprep.subr.mxu0 0.0
      %1700 = vmatpush1.msra.mxu0 0.0
      %1701 = vmatprep.subr.mxu0 0.0
      %1702 = vmatpush1.msra.mxu0 0.0
      %1703 = vmatprep.subr.mxu0 0.0
      %1704 = vmatpush1.msra.mxu0 0.0
      %1705 = vmatprep.subr.mxu0 0.0
      %1706 = vmatpush1.msra.mxu0 0.0
      %1707 = vmatprep.subr.mxu0 0.0
      %1708 = vmatpush1.msra.mxu0 0.0
      %1709 = vmatprep.subr.mxu0 0.0
      %1710 = vmatpush1.msra.mxu0 0.0
      %1711 = vmatprep.subr.mxu0 0.0
      %1712 = vmatpush1.msra.mxu0 0.0
      %1713 = vmatprep.subr.mxu0 0.0
      %1714 = vmatpush1.msra.mxu0 0.0
      %1715 = vmatprep.subr.mxu0 0.0
      %1716 = vmatpush1.msra.mxu0 0.0
      %1717 = vmatprep.subr.mxu0 0.0
      %1718 = vmatpush1.msra.mxu0 0.0
      %1719 = vmatprep.subr.mxu0 0.0
      %1720 = vmatpush1.msra.mxu0 %v1689
      %1721 = vmatprep.subr.mxu0 0.0
      %1722 = vmatpush1.msra.mxu0 %v1590
      %1723 = vmatprep.subr.mxu0 0.0
      %1724 = vmatpush2.msra.mxu0 0.0
      %1725 = vmatprep.subr.mxu0 0.0
      %1726 = vmatpush2.msra.mxu0 0.0
      %1727 = vmatprep.subr.mxu0 0.0
      %1728 = vmatpush2.msra.mxu0 0.0
      %1729 = vmatprep.subr.mxu0 0.0
      %1730 = vmatpush2.msra.mxu0 0.0
      %1731 = vmatprep.subr.mxu0 0.0
      %1732 = vmatpush2.msra.mxu0 0.0
      %1733 = vmatprep.subr.mxu0 0.0
      %1734 = vmatpush2.msra.mxu0 0.0
      %1735 = vmatprep.subr.mxu0 0.0
      %1736 = vmatpush2.msra.mxu0 0.0
      %1737 = vmatprep.subr.mxu0 0.0
      %1738 = vmatpush2.msra.mxu0 0.0
      %1739 = vmatprep.subr.mxu0 0.0
      %1740 = vmatpush2.msra.mxu0 0.0
      %1741 = vmatprep.subr.mxu0 0.0
      %1742 = vmatpush2.msra.mxu0 0.0
      %1743 = vmatprep.subr.mxu0 0.0
      %1744 = vmatpush2.msra.mxu0 0.0
      %1745 = vmatprep.subr.mxu0 0.0
      %1746 = vmatpush2.msra.mxu0 0.0
      %1747 = vmatprep.subr.mxu0 0.0
      %1748 = vmatpush2.msra.mxu0 0.0
      %1749 = vmatprep.subr.mxu0 0.0
      %1750 = vmatpush2.msra.mxu0 0.0
      %1751 = vmatprep.subr.mxu0 0.0
      %1752 = vmatpush2.msra.mxu0 0.0
      %1753 = vmatprep.subr.mxu0 0.0
      %1754 = vmatpush2.msra.mxu0 0.0
      %1755 = vmatprep.mubr.f32.mxu0 0.0
      %1756 = vmatmul.mubr.f32.gmra.mxu0 %v1593
      %v1757 = vpop.f32.mrf.mxu0
      %v1758 = vadd.f32 0.0, %v1757
      %v1759 = vpop.f32.mrf.mxu0
      %1760 = vmatprep.mubr.f32.mxu0 0.0
      %1761 = vmatmul.mubr.f32.gmra.mxu0 %v1596
      %v1762 = vpop.f32.mrf.mxu0
      %v1763 = vadd.f32 0.0, %v1762
      %v1764 = vpop.f32.mrf.mxu0
      %1765 = vmatprep.mubr.f32.mxu0 0.0
      %1766 = vmatmul.mubr.f32.gmra.mxu0 %v1599
      %v1767 = vpop.f32.mrf.mxu0
      %v1768 = vadd.f32 0.0, %v1767
      %v1769 = vpop.f32.mrf.mxu0
      %1770 = vmatprep.mubr.f32.mxu0 0.0
      %1771 = vmatmul.mubr.f32.gmra.mxu0 %v1602
      %v1772 = vpop.f32.mrf.mxu0
      %v1773 = vadd.f32 0.0, %v1772
      %v1774 = vpop.f32.mrf.mxu0
      %1775 = vmatprep.mubr.f32.mxu0 0.0
      %1776 = vmatmul.mubr.f32.gmra.mxu0 %v1605
      %v1777 = vpop.f32.mrf.mxu0
      %v1778 = vadd.f32 0.0, %v1777
      %v1779 = vpop.f32.mrf.mxu0
      %1780 = vmatprep.mubr.f32.mxu0 0.0
      %1781 = vmatmul.mubr.f32.gmra.mxu0 %v1608
      %v1782 = vpop.f32.mrf.mxu0
      %v1783 = vadd.f32 0.0, %v1782
      %v1784 = vpop.f32.mrf.mxu0
      %1785 = vmatprep.mubr.f32.mxu0 0.0
      %1786 = vmatmul.mubr.f32.gmra.mxu0 %v1611
      %v1787 = vpop.f32.mrf.mxu0
      %v1788 = vadd.f32 0.0, %v1787
      %v1789 = vpop.f32.mrf.mxu0
      %1790 = vmatprep.mubr.f32.mxu0 0.0
      %1791 = vmatmul.mubr.f32.gmra.mxu0 %v1614
      %v1792 = vpop.f32.mrf.mxu0
      %v1793 = vadd.f32 0.0, %v1792
      %v1794 = vpop.f32.mrf.mxu0
      %1795 = vmatprep.mubr.f32.mxu0 0.0
      %1796 = vmatmul.mubr.f32.gmra.mxu0 %v1617
      %v1797 = vpop.f32.mrf.mxu0
      %v1798 = vadd.f32 0.0, %v1797
      %v1799 = vpop.f32.mrf.mxu0
      %1800 = vmatprep.mubr.f32.mxu0 0.0
      %1801 = vmatmul.mubr.f32.gmra.mxu0 %v1620
      %v1802 = vpop.f32.mrf.mxu0
      %v1803 = vadd.f32 0.0, %v1802
      %v1804 = vpop.f32.mrf.mxu0
      %1805 = vmatprep.mubr.f32.mxu0 0.0
      %1806 = vmatmul.mubr.f32.gmra.mxu0 %v1623
      %v1807 = vpop.f32.mrf.mxu0
      %v1808 = vadd.f32 0.0, %v1807
      %v1809 = vpop.f32.mrf.mxu0
      %1810 = vmatprep.mubr.f32.mxu0 0.0
      %1811 = vmatmul.mubr.f32.gmra.mxu0 %v1626
      %v1812 = vpop.f32.mrf.mxu0
      %v1813 = vadd.f32 0.0, %v1812
      %v1814 = vpop.f32.mrf.mxu0
      %1815 = vmatprep.mubr.f32.mxu0 0.0
      %1816 = vmatmul.mubr.f32.gmra.mxu0 %v1629
      %v1817 = vpop.f32.mrf.mxu0
      %v1818 = vadd.f32 0.0, %v1817
      %v1819 = vpop.f32.mrf.mxu0
      %1820 = vmatprep.mubr.f32.mxu0 0.0
      %1821 = vmatmul.mubr.f32.gmra.mxu0 %v1632
      %v1822 = vpop.f32.mrf.mxu0
      %v1823 = vadd.f32 0.0, %v1822
      %v1824 = vpop.f32.mrf.mxu0
      %1825 = vmatprep.mubr.f32.mxu0 0.0
      %1826 = vmatmul.mubr.f32.gmra.mxu0 %v1635
      %v1827 = vpop.f32.mrf.mxu0
      %v1828 = vadd.f32 0.0, %v1827
      %v1829 = vpop.f32.mrf.mxu0
      %1830 = vmatprep.mubr.f32.mxu0 0.0
      %1831 = vmatmul.mubr.f32.gmra.mxu0 %v1638
      %v1832 = vpop.f32.mrf.mxu0
      %v1833 = vadd.f32 0.0, %v1832
      %v1834 = vpop.f32.mrf.mxu0
      %1835 = vmatprep.mubr.f32.mxu0 0.0
      %1836 = vmatmul.mubr.f32.gmra.mxu0 %v1641
      %v1837 = vpop.f32.mrf.mxu0
      %v1838 = vadd.f32 0.0, %v1837
      %v1839 = vpop.f32.mrf.mxu0
      %1840 = vmatprep.mubr.f32.mxu0 0.0
      %1841 = vmatmul.mubr.f32.gmra.mxu0 %v1644
      %v1842 = vpop.f32.mrf.mxu0
      %v1843 = vadd.f32 0.0, %v1842
      %v1844 = vpop.f32.mrf.mxu0
      %1845 = vmatprep.mubr.f32.mxu0 0.0
      %1846 = vmatmul.mubr.f32.gmra.mxu0 %v1647
      %v1847 = vpop.f32.mrf.mxu0
      %v1848 = vadd.f32 0.0, %v1847
      %v1849 = vpop.f32.mrf.mxu0
      %1850 = vmatprep.mubr.f32.mxu0 0.0
      %1851 = vmatmul.mubr.f32.gmra.mxu0 %v1650
      %v1852 = vpop.f32.mrf.mxu0
      %v1853 = vadd.f32 0.0, %v1852
      %v1854 = vpop.f32.mrf.mxu0
      %1855 = vmatprep.mubr.f32.mxu0 0.0
      %1856 = vmatmul.mubr.f32.gmra.mxu0 %v1653
      %v1857 = vpop.f32.mrf.mxu0
      %v1858 = vadd.f32 0.0, %v1857
      %v1859 = vpop.f32.mrf.mxu0
      %1860 = vmatprep.mubr.f32.mxu0 0.0
      %1861 = vmatmul.mubr.f32.gmra.mxu0 %v1656
      %v1862 = vpop.f32.mrf.mxu0
      %v1863 = vadd.f32 0.0, %v1862
      %v1864 = vpop.f32.mrf.mxu0
      %1865 = vmatprep.mubr.f32.mxu0 0.0
      %1866 = vmatmul.mubr.f32.gmra.mxu0 %v1659
      %v1867 = vpop.f32.mrf.mxu0
      %v1868 = vadd.f32 0.0, %v1867
      %v1869 = vpop.f32.mrf.mxu0
      %1870 = vmatprep.mubr.f32.mxu0 0.0
      %1871 = vmatmul.mubr.f32.gmra.mxu0 %v1662
      %v1872 = vpop.f32.mrf.mxu0
      %v1873 = vadd.f32 0.0, %v1872
      %v1874 = vpop.f32.mrf.mxu0
      %1875 = vmatprep.mubr.f32.mxu0 0.0
      %1876 = vmatmul.mubr.f32.gmra.mxu0 %v1665
      %v1877 = vpop.f32.mrf.mxu0
      %v1878 = vadd.f32 0.0, %v1877
      %v1879 = vpop.f32.mrf.mxu0
      %1880 = vmatprep.mubr.f32.mxu0 0.0
      %1881 = vmatmul.mubr.f32.gmra.mxu0 %v1668
      %v1882 = vpop.f32.mrf.mxu0
      %v1883 = vadd.f32 0.0, %v1882
      %v1884 = vpop.f32.mrf.mxu0
      %1885 = vmatprep.mubr.f32.mxu0 0.0
      %1886 = vmatmul.mubr.f32.gmra.mxu0 %v1671
      %v1887 = vpop.f32.mrf.mxu0
      %v1888 = vadd.f32 0.0, %v1887
      %v1889 = vpop.f32.mrf.mxu0
      %1890 = vmatprep.mubr.f32.mxu0 0.0
      %1891 = vmatmul.mubr.f32.gmra.mxu0 %v1674
      %v1892 = vpop.f32.mrf.mxu0
      %v1893 = vadd.f32 0.0, %v1892
      %v1894 = vpop.f32.mrf.mxu0
      %1895 = vmatprep.mubr.f32.mxu0 0.0
      %1896 = vmatmul.mubr.f32.gmra.mxu0 %v1677
      %v1897 = vpop.f32.mrf.mxu0
      %v1898 = vadd.f32 0.0, %v1897
      %v1899 = vpop.f32.mrf.mxu0
      %1900 = vmatprep.mubr.f32.mxu0 0.0
      %1901 = vmatmul.mubr.f32.gmra.mxu0 %v1680
      %v1902 = vpop.f32.mrf.mxu0
      %v1903 = vadd.f32 0.0, %v1902
      %v1904 = vpop.f32.mrf.mxu0
      %1905 = vmatprep.mubr.f32.mxu0 0.0
      %1906 = vmatmul.mubr.f32.gmra.mxu0 %v1683
      %v1907 = vpop.f32.mrf.mxu0
      %v1908 = vadd.f32 0.0, %v1907
      %v1909 = vpop.f32.mrf.mxu0
      %1910 = vmatprep.mubr.f32.mxu0 0.0
      %1911 = vmatmul.mubr.f32.gmra.mxu0 %v1686
      %v1912 = vpop.f32.mrf.mxu0
      %v1913 = vadd.f32 0.0, %v1912
      %v1914 = vpop.f32.mrf.mxu0
      %1915 = vdwg.mxu0
      %v1916 = vadd.f32 %v1525, %v1758
      %v1917 = vadd.f32 %v1526, %v1763
      %v1918 = vadd.f32 %v1527, %v1768
      %v1919 = vadd.f32 %v1528, %v1773
      %v1920 = vadd.f32 %v1529, %v1778
      %v1921 = vadd.f32 %v1530, %v1783
      %v1922 = vadd.f32 %v1531, %v1788
      %v1923 = vadd.f32 %v1532, %v1793
      %v1924 = vadd.f32 %v1533, %v1798
      %v1925 = vadd.f32 %v1534, %v1803
      %v1926 = vadd.f32 %v1535, %v1808
      %v1927 = vadd.f32 %v1536, %v1813
      %v1928 = vadd.f32 %v1537, %v1818
      %v1929 = vadd.f32 %v1538, %v1823
      %v1930 = vadd.f32 %v1539, %v1828
      %v1931 = vadd.f32 %v1540, %v1833
      %v1932 = vadd.f32 %v1541, %v1838
      %v1933 = vadd.f32 %v1542, %v1843
      %v1934 = vadd.f32 %v1543, %v1848
      %v1935 = vadd.f32 %v1544, %v1853
      %v1936 = vadd.f32 %v1545, %v1858
      %v1937 = vadd.f32 %v1546, %v1863
      %v1938 = vadd.f32 %v1547, %v1868
      %v1939 = vadd.f32 %v1548, %v1873
      %v1940 = vadd.f32 %v1549, %v1878
      %v1941 = vadd.f32 %v1550, %v1883
      %v1942 = vadd.f32 %v1551, %v1888
      %v1943 = vadd.f32 %v1552, %v1893
      %v1944 = vadd.f32 %v1553, %v1898
      %v1945 = vadd.f32 %v1554, %v1903
      %v1946 = vadd.f32 %v1555, %v1908
      %v1947 = vadd.f32 %v1556, %v1913
      %1948 = vst.msk [vmem:[#allocation3] sm:$0xff] %vm207, %v1916
      %1949 = vst.msk [vmem:[#allocation3 + $0x8] sm:$0xff] %vm207, %v1917
      %1950 = vst.msk [vmem:[#allocation3 + $0x10] sm:$0xff] %vm207, %v1918
      %1951 = vst.msk [vmem:[#allocation3 + $0x18] sm:$0xff] %vm207, %v1919
      %1952 = vst.msk [vmem:[#allocation3 + $0x20] sm:$0xff] %vm207, %v1920
      %1953 = vst.msk [vmem:[#allocation3 + $0x28] sm:$0xff] %vm207, %v1921
      %1954 = vst.msk [vmem:[#allocation3 + $0x30] sm:$0xff] %vm207, %v1922
      %1955 = vst.msk [vmem:[#allocation3 + $0x38] sm:$0xff] %vm207, %v1923
      %1956 = vst.msk [vmem:[#allocation3 + $0x40] sm:$0xff] %vm207, %v1924
      %1957 = vst.msk [vmem:[#allocation3 + $0x48] sm:$0xff] %vm207, %v1925
      %1958 = vst.msk [vmem:[#allocation3 + $0x50] sm:$0xff] %vm207, %v1926
      %1959 = vst.msk [vmem:[#allocation3 + $0x58] sm:$0xff] %vm207, %v1927
      %1960 = vst.msk [vmem:[#allocation3 + $0x60] sm:$0xff] %vm207, %v1928
      %1961 = vst.msk [vmem:[#allocation3 + $0x68] sm:$0xff] %vm207, %v1929
      %1962 = vst.msk [vmem:[#allocation3 + $0x70] sm:$0xff] %vm207, %v1930
      %1963 = vst.msk [vmem:[#allocation3 + $0x78] sm:$0xff] %vm207, %v1931
      %1964 = vst.msk [vmem:[#allocation3 + $0x80] sm:$0xff] %vm207, %v1932
      %1965 = vst.msk [vmem:[#allocation3 + $0x88] sm:$0xff] %vm207, %v1933
      %1966 = vst.msk [vmem:[#allocation3 + $0x90] sm:$0xff] %vm207, %v1934
      %1967 = vst.msk [vmem:[#allocation3 + $0x98] sm:$0xff] %vm207, %v1935
      %1968 = vst.msk [vmem:[#allocation3 + $0xa0] sm:$0xff] %vm207, %v1936
      %1969 = vst.msk [vmem:[#allocation3 + $0xa8] sm:$0xff] %vm207, %v1937
      %1970 = vst.msk [vmem:[#allocation3 + $0xb0] sm:$0xff] %vm207, %v1938
      %1971 = vst.msk [vmem:[#allocation3 + $0xb8] sm:$0xff] %vm207, %v1939
      %1972 = vst.msk [vmem:[#allocation3 + $0xc0] sm:$0xff] %vm207, %v1940
      %1973 = vst.msk [vmem:[#allocation3 + $0xc8] sm:$0xff] %vm207, %v1941
      %1974 = vst.msk [vmem:[#allocation3 + $0xd0] sm:$0xff] %vm207, %v1942
      %1975 = vst.msk [vmem:[#allocation3 + $0xd8] sm:$0xff] %vm207, %v1943
      %1976 = vst.msk [vmem:[#allocation3 + $0xe0] sm:$0xff] %vm207, %v1944
      %1977 = vst.msk [vmem:[#allocation3 + $0xe8] sm:$0xff] %vm207, %v1945
      %1978 = vst.msk [vmem:[#allocation3 + $0xf0] sm:$0xff] %vm207, %v1946
      %1979 = vst.msk [vmem:[#allocation3 + $0xf8] sm:$0xff] %vm207, %v1947
      %v1980 = vld [vmem:[#allocation3] sm:$0xff]
      %v1981 = vld [vmem:[#allocation3 + $0x8] sm:$0xff]
      %v1982 = vld [vmem:[#allocation3 + $0x10] sm:$0xff]
      %v1983 = vld [vmem:[#allocation3 + $0x18] sm:$0xff]
      %v1984 = vld [vmem:[#allocation3 + $0x20] sm:$0xff]
      %v1985 = vld [vmem:[#allocation3 + $0x28] sm:$0xff]
      %v1986 = vld [vmem:[#allocation3 + $0x30] sm:$0xff]
      %v1987 = vld [vmem:[#allocation3 + $0x38] sm:$0xff]
      %v1988 = vld [vmem:[#allocation3 + $0x40] sm:$0xff]
      %v1989 = vld [vmem:[#allocation3 + $0x48] sm:$0xff]
      %v1990 = vld [vmem:[#allocation3 + $0x50] sm:$0xff]
      %v1991 = vld [vmem:[#allocation3 + $0x58] sm:$0xff]
      %v1992 = vld [vmem:[#allocation3 + $0x60] sm:$0xff]
      %v1993 = vld [vmem:[#allocation3 + $0x68] sm:$0xff]
      %v1994 = vld [vmem:[#allocation3 + $0x70] sm:$0xff]
      %v1995 = vld [vmem:[#allocation3 + $0x78] sm:$0xff]
      %v1996 = vld [vmem:[#allocation3 + $0x80] sm:$0xff]
      %v1997 = vld [vmem:[#allocation3 + $0x88] sm:$0xff]
      %v1998 = vld [vmem:[#allocation3 + $0x90] sm:$0xff]
      %v1999 = vld [vmem:[#allocation3 + $0x98] sm:$0xff]
      %v2000 = vld [vmem:[#allocation3 + $0xa0] sm:$0xff]
      %v2001 = vld [vmem:[#allocation3 + $0xa8] sm:$0xff]
      %v2002 = vld [vmem:[#allocation3 + $0xb0] sm:$0xff]
      %v2003 = vld [vmem:[#allocation3 + $0xb8] sm:$0xff]
      %v2004 = vld [vmem:[#allocation3 + $0xc0] sm:$0xff]
      %v2005 = vld [vmem:[#allocation3 + $0xc8] sm:$0xff]
      %v2006 = vld [vmem:[#allocation3 + $0xd0] sm:$0xff]
      %v2007 = vld [vmem:[#allocation3 + $0xd8] sm:$0xff]
      %v2008 = vld [vmem:[#allocation3 + $0xe0] sm:$0xff]
      %v2009 = vld [vmem:[#allocation3 + $0xe8] sm:$0xff]
      %v2010 = vld [vmem:[#allocation3 + $0xf0] sm:$0xff]
      %v2011 = vld [vmem:[#allocation3 + $0xf8] sm:$0xff]
      %v2012 = vld [vmem:[%s2] sm:$0x1]
      %v2014 = vlaneseq
      %v2015 = vshrl.u32 %v2014, 7
      %v2016 = vsub.s32 0, %v2015
      %v2017 = vrot.slane %v2012, %v2016
      %v2019 = vadd.f32 %v1980, %v2017
      %v2020 = vadd.f32 %v1981, %v2017
      %v2021 = vadd.f32 %v1982, %v2017
      %v2022 = vadd.f32 %v1983, %v2017
      %v2023 = vadd.f32 %v1984, %v2017
      %v2024 = vadd.f32 %v1985, %v2017
      %v2025 = vadd.f32 %v1986, %v2017
      %v2026 = vadd.f32 %v1987, %v2017
      %v2027 = vadd.f32 %v1988, %v2017
      %v2028 = vadd.f32 %v1989, %v2017
      %v2029 = vadd.f32 %v1990, %v2017
      %v2030 = vadd.f32 %v1991, %v2017
      %v2031 = vadd.f32 %v1992, %v2017
      %v2032 = vadd.f32 %v1993, %v2017
      %v2033 = vadd.f32 %v1994, %v2017
      %v2034 = vadd.f32 %v1995, %v2017
      %v2035 = vadd.f32 %v1996, %v2017
      %v2036 = vadd.f32 %v1997, %v2017
      %v2037 = vadd.f32 %v1998, %v2017
      %v2038 = vadd.f32 %v1999, %v2017
      %v2039 = vadd.f32 %v2000, %v2017
      %v2040 = vadd.f32 %v2001, %v2017
      %v2041 = vadd.f32 %v2002, %v2017
      %v2042 = vadd.f32 %v2003, %v2017
      %v2043 = vadd.f32 %v2004, %v2017
      %v2044 = vadd.f32 %v2005, %v2017
      %v2045 = vadd.f32 %v2006, %v2017
      %v2046 = vadd.f32 %v2007, %v2017
      %v2047 = vadd.f32 %v2008, %v2017
      %v2048 = vadd.f32 %v2009, %v2017
      %v2049 = vadd.f32 %v2010, %v2017
      %v2050 = vadd.f32 %v2011, %v2017
      %2051 = vst.msk [vmem:[%s170] sm:$0xff] %vm207, %v2019
      %2052 = vst.msk [vmem:[%s170 + $0x8] sm:$0xff] %vm207, %v2020
      %2053 = vst.msk [vmem:[%s170 + $0x10] sm:$0xff] %vm207, %v2021
      %2054 = vst.msk [vmem:[%s170 + $0x18] sm:$0xff] %vm207, %v2022
      %2055 = vst.msk [vmem:[%s170 + $0x20] sm:$0xff] %vm207, %v2023
      %2056 = vst.msk [vmem:[%s170 + $0x28] sm:$0xff] %vm207, %v2024
      %2057 = vst.msk [vmem:[%s170 + $0x30] sm:$0xff] %vm207, %v2025
      %2058 = vst.msk [vmem:[%s170 + $0x38] sm:$0xff] %vm207, %v2026
      %2059 = vst.msk [vmem:[%s170 + $0x40] sm:$0xff] %vm207, %v2027
      %2060 = vst.msk [vmem:[%s170 + $0x48] sm:$0xff] %vm207, %v2028
      %2061 = vst.msk [vmem:[%s170 + $0x50] sm:$0xff] %vm207, %v2029
      %2062 = vst.msk [vmem:[%s170 + $0x58] sm:$0xff] %vm207, %v2030
      %2063 = vst.msk [vmem:[%s170 + $0x60] sm:$0xff] %vm207, %v2031
      %2064 = vst.msk [vmem:[%s170 + $0x68] sm:$0xff] %vm207, %v2032
      %2065 = vst.msk [vmem:[%s170 + $0x70] sm:$0xff] %vm207, %v2033
      %2066 = vst.msk [vmem:[%s170 + $0x78] sm:$0xff] %vm207, %v2034
      %2067 = vst.msk [vmem:[%s170 + $0x80] sm:$0xff] %vm207, %v2035
      %2068 = vst.msk [vmem:[%s170 + $0x88] sm:$0xff] %vm207, %v2036
      %2069 = vst.msk [vmem:[%s170 + $0x90] sm:$0xff] %vm207, %v2037
      %2070 = vst.msk [vmem:[%s170 + $0x98] sm:$0xff] %vm207, %v2038
      %2071 = vst.msk [vmem:[%s170 + $0xa0] sm:$0xff] %vm207, %v2039
      %2072 = vst.msk [vmem:[%s170 + $0xa8] sm:$0xff] %vm207, %v2040
      %2073 = vst.msk [vmem:[%s170 + $0xb0] sm:$0xff] %vm207, %v2041
      %2074 = vst.msk [vmem:[%s170 + $0xb8] sm:$0xff] %vm207, %v2042
      %2075 = vst.msk [vmem:[%s170 + $0xc0] sm:$0xff] %vm207, %v2043
      %2076 = vst.msk [vmem:[%s170 + $0xc8] sm:$0xff] %vm207, %v2044
      %2077 = vst.msk [vmem:[%s170 + $0xd0] sm:$0xff] %vm207, %v2045
      %2078 = vst.msk [vmem:[%s170 + $0xd8] sm:$0xff] %vm207, %v2046
      %2079 = vst.msk [vmem:[%s170 + $0xe0] sm:$0xff] %vm207, %v2047
      %2080 = vst.msk [vmem:[%s170 + $0xe8] sm:$0xff] %vm207, %v2048
      %2081 = vst.msk [vmem:[%s170 + $0xf0] sm:$0xff] %vm207, %v2049
      %2082 = vst.msk [vmem:[%s170 + $0xf8] sm:$0xff] %vm207, %v2050
      %p2083 = scmp.lt.s32.totalorder %s14, 1
      %s2084 = scalar_select %p2083, %s14, 1
      %s2085 = smul.addr %s2084, 32
      %s2086 = smul.addr %s2085, 8
      %s2087 = scalar_lea.vmem %s3, %s2086
      // Predicated region
      $region33: #{tpu_custom_call.1} parent=31 // pred_check
        %p2088 = pneg %p100
      $region34: #{tpu_custom_call.1} parent=31 // pred_check_branch
        %2090 = sbr.rel (%p2088) target = $region36
      $region35: #{tpu_custom_call.1} parent=31 // pred_region
        _
      $region36: #{tpu_custom_call.1} parent=31 // pred_fallthru
        _
    $region32: #{tpu_custom_call.1} parent=5 // pred_fallthru
      _
    %p2091 = scmp.le.s32.totalorder 2, %s9
    // Predicated region
    $region37: #{tpu_custom_call.1} parent=5 // pred_check
      %p2092 = pneg %p2091
    $region38: #{tpu_custom_call.1} parent=5 // pred_check_branch
      %2094 = sbr.rel (%p2092) target = $region40
    $region39: #{tpu_custom_call.1} parent=5 // pred_region
      %s2095 = ssub.s32 %s9, 2
      // Predicated region
      $region41: #{tpu_custom_call.1} parent=39 // pred_check
        %p2096 = pneg %p106
      $region42: #{tpu_custom_call.1} parent=39 // pred_check_branch
        %2098 = sbr.rel (%p2096) target = $region44
      $region43: #{tpu_custom_call.1} parent=39 // pred_region
        %p2099 = scmp.lt.s32.totalorder %s15, 1
        %s2100 = scalar_select %p2099, %s15, 1
        %s2101 = smul.addr %s2100, 32
        %s2102 = smul.addr %s2101, 8
        %s2103 = scalar_lea.vmem %s3, %s2102
      $region44: #{tpu_custom_call.1} parent=39 // pred_fallthru
        _
    $region40: #{tpu_custom_call.1} parent=5 // pred_fallthru
      _
  $region6: #{tpu_custom_call.1} parent=0 // loop_footer
    %s13 = sadd.s32 1, %s9
  $region7: #{tpu_custom_call.1} parent=0 // loop_footer_branch
    %8 = sbr.rel target = $region3
  $region8: #{tpu_custom_call.1} parent=0 // loop_exit
    _

</llo_original>
